<compile_context>
chip_gen: v5e
topology: v5e:2x2
jax: 0.10.0
libtpu: 0.0.40
codegen_flags: <defaults>
</compile_context>

<pallas_src>
import functools
import math

import jax
import jax.numpy as jnp
from jax.experimental import pallas as pl
from jax.experimental.pallas import tpu as pltpu


# ----------------------------------------------------------------------------
# Glue: make_coord / rel-coord & rel-scale (pure index math, plain JAX)
# ----------------------------------------------------------------------------
def make_coord(shape):
    """Cell-center coordinates in [-1, 1]; returns [h, w, 2] (y, x)."""
    seqs = []
    for n in shape:
        r = 1.0 / n
        seqs.append(-1.0 + r + 2.0 * r * jnp.arange(n, dtype=jnp.float32))
    yy, xx = jnp.meshgrid(seqs[0], seqs[1], indexing="ij")
    return jnp.stack([yy, xx], axis=-1)


def rel_coord_scale(feat_hw, tar_size):
    """rel_coord [H, W, 2] (batch independent) plus the two constant
    rel_scale components (rel_scale is spatially constant)."""
    H, W = feat_hw
    Ht, Wt = tar_size
    feat_coord = make_coord((H, W))            # [H, W, 2]
    tar_coord = make_coord((Ht, Wt))           # [Ht, Wt, 2]
    # grid_sample(nearest, align_corners=False): unnormalize, round, clip.
    iy = ((feat_coord[..., 0] + 1.0) * Ht - 1.0) / 2.0
    ix = ((feat_coord[..., 1] + 1.0) * Wt - 1.0) / 2.0
    iy = jnp.clip(jnp.round(iy).astype(jnp.int32), 0, Ht - 1)
    ix = jnp.clip(jnp.round(ix).astype(jnp.int32), 0, Wt - 1)
    sample = tar_coord[iy, ix]                 # [H, W, 2]
    rel_coord = (feat_coord - sample) * jnp.array([H, W], jnp.float32)
    rs0 = 2.0 / Ht * H
    rs1 = 2.0 / Wt * W
    return rel_coord, rs0, rs1


def _band_weight(w_ky, win_cols, wout_cols, C):
    """Fold the 3 kx taps + Cin contraction of one kernel row into a single
    [win_cols*C, wout_cols*C] band matrix.

    w_ky: [3, C_in, C_out] (kx, ci, co) for a fixed ky.
    M[wi*C + ci, wo*C + co] = w_ky[wi - wo, ci, co] if 0 <= wi - wo <= 2 else 0
    """
    wi = jnp.arange(win_cols)[:, None]
    wo = jnp.arange(wout_cols)[None, :]
    dx = wi - wo
    valid = (dx >= 0) & (dx <= 2)
    blocks = jnp.where(valid[:, :, None, None],
                       w_ky[jnp.clip(dx, 0, 2)], 0.0)     # [win, wout, C, C]
    return blocks.transpose(0, 2, 1, 3).reshape(win_cols * C, wout_cols * C)


# ----------------------------------------------------------------------------
# Pallas kernel: one (batch, H-strip) step, fully fused
# ----------------------------------------------------------------------------
def _feat_enhance_kernel(xs_ref, cf_ref, fa_ref, w1_ref, b1_ref, w2_ref,
                         b2_ref, out_ref, *, TH, W, C):
    """
    xs_ref : [TH+4, (W+4)*C]  input strip (zero-padded by 2 in H/W), lane-dense
    cf_ref : [TH+2, (W+2)*C]  rel_coord channel factor (c%2), 0 outside image
    fa_ref : [TH+2, (W+2)*C]  fc(rel_scale) constant, 0 outside image
    w1_ref : [3, (W+4)*C, (W+2)*C]  conv1 band weights (one per ky)
    b1_ref : [1, (W+2)*C]           conv1 bias, tiled over W
    w2_ref : [3, (W+2)*C, W*C]      conv2 band weights
    b2_ref : [1, W*C]               conv2 bias, tiled over W
    out_ref: [TH, W*C]              res + conv2(x)
    """
    xs = xs_ref[...]

    # conv1 over the (TH+2, W+2) extended window: 3 lane-dense matmuls.
    acc1 = jnp.zeros((TH + 2, (W + 2) * C), jnp.float32)
    for ky in range(3):
        acc1 = acc1 + jnp.dot(xs[ky:ky + TH + 2, :], w1_ref[ky],
                              preferred_element_type=jnp.float32)
    res_ext = acc1 + b1_ref[...]

    # x = res * rel_coord[..., c % 2] + fc(rel_scale).  cf/fa are pre-masked to
    # zero outside the image so the conv2 halo sees proper zero padding.
    x_ext = res_ext * cf_ref[...] + fa_ref[...]

    # conv2 over the (TH, W) interior: 3 lane-dense matmuls.
    acc2 = jnp.zeros((TH, W * C), jnp.float32)
    for ky in range(3):
        acc2 = acc2 + jnp.dot(x_ext[ky:ky + TH, :], w2_ref[ky],
                              preferred_element_type=jnp.float32)
    y = acc2 + b2_ref[...]

    # residual: interior (in-image rows/cols) of the conv1 result.
    res_int = res_ext[1:TH + 1, C:(W + 1) * C]
    out_ref[...] = res_int + y


# ----------------------------------------------------------------------------
# Wrapper
# ----------------------------------------------------------------------------
@functools.partial(jax.jit, static_argnames=("tar_size", "strip"))
def feat_enhance(feat_nchw, params, *, tar_size, strip=8):
    """feat_nchw: [B, C, H, W] float32 (PyTorch layout).  Returns NCHW."""
    w1, b1, w2, b2, fcw = params          # w: [3,3,Cin,Cout], b: [C], fcw: [2,C]
    B, C, H, W = feat_nchw.shape
    assert C % 2 == 0, "n_feats must be even (torch.split(x, 2, dim=1))"

    # H-strip size: largest divisor of H that is <= strip.
    TH = min(strip, H)
    while H % TH:
        TH -= 1
    nH = H // TH
    WinC, WextC, WC = (W + 4) * C, (W + 2) * C, W * C

    # ---- glue: coordinates, channel factor, fc(rel_scale) constant ----------
    rel_coord, rs0, rs1 = rel_coord_scale((H, W), tar_size)       # [H, W, 2]
    rc_pad = jnp.pad(rel_coord, ((1, 1), (1, 1), (0, 0)))         # zero halo
    cf_ext = jnp.tile(rc_pad, (1, 1, C // 2)).reshape(H + 2, WextC)
    fc_vec = rs0 * fcw[0] + rs1 * fcw[1]                          # [C]
    valid = jnp.pad(jnp.ones((H, W), jnp.float32), ((1, 1), (1, 1)))
    fa_ext = (valid[:, :, None] * fc_vec[None, None, :]).reshape(H + 2, WextC)

    # ---- lane-dense, haloed H-strips ----------------------------------------
    x_nhwc = jnp.transpose(feat_nchw, (0, 2, 3, 1))
    x_pad = jnp.pad(x_nhwc, ((0, 0), (2, 2), (2, 2), (0, 0)))
    x_flat = x_pad.reshape(B, H + 4, WinC)
    xs_strips = jnp.stack([x_flat[:, s * TH: s * TH + TH + 4]
                           for s in range(nH)], axis=1)       # [B,nH,TH+4,WinC]
    cf_strips = jnp.stack([cf_ext[s * TH: s * TH + TH + 2]
                           for s in range(nH)], axis=0)       # [nH,TH+2,WextC]
    fa_strips = jnp.stack([fa_ext[s * TH: s * TH + TH + 2]
                           for s in range(nH)], axis=0)

    # ---- band weight matrices & tiled biases --------------------------------
    w1m = jnp.stack([_band_weight(w1[ky], W + 4, W + 2, C) for ky in range(3)])
    w2m = jnp.stack([_band_weight(w2[ky], W + 2, W, C) for ky in range(3)])
    b1t = jnp.tile(b1, W + 2).reshape(1, WextC)
    b2t = jnp.tile(b2, W).reshape(1, WC)

    # ---- cost / VMEM hints ---------------------------------------------------
    flops = 2 * B * nH * 3 * ((TH + 2) * WinC * WextC + TH * WextC * WC)
    bytes_accessed = 4 * (B * nH * (TH + 4) * WinC
                          + 2 * nH * (TH + 2) * WextC
                          + 3 * WinC * WextC + WextC
                          + 3 * WextC * WC + WC
                          + B * H * W * C)
    block_bytes = 4 * ((TH + 4) * WinC + 2 * (TH + 2) * WextC
                       + 3 * WinC * WextC + WextC + 3 * WextC * WC + WC
                       + TH * WC)
    vmem_limit = int(min(32 * 1024 * 1024,
                         max(16 * 1024 * 1024, 8 * block_bytes)))

    kernel = functools.partial(_feat_enhance_kernel, TH=TH, W=W, C=C)
    out_strips = pl.pallas_call(
        kernel,
        out_shape=jax.ShapeDtypeStruct((B, nH, TH, WC), jnp.float32),
        grid_spec=pltpu.PrefetchScalarGridSpec(
            num_scalar_prefetch=0,
            grid=(B, nH),
            in_specs=[
                pl.BlockSpec((None, None, TH + 4, WinC),
                             lambda b, s: (b, s, 0, 0)),
                pl.BlockSpec((None, TH + 2, WextC), lambda b, s: (s, 0, 0)),
                pl.BlockSpec((None, TH + 2, WextC), lambda b, s: (s, 0, 0)),
                pl.BlockSpec((3, WinC, WextC), lambda b, s: (0, 0, 0)),
                pl.BlockSpec((1, WextC), lambda b, s: (0, 0)),
                pl.BlockSpec((3, WextC, WC), lambda b, s: (0, 0, 0)),
                pl.BlockSpec((1, WC), lambda b, s: (0, 0)),
            ],
            out_specs=pl.BlockSpec((None, None, TH, WC),
                                   lambda b, s: (b, s, 0, 0)),
        ),
        compiler_params=pltpu.CompilerParams(
            dimension_semantics=("parallel", "parallel"),
            vmem_limit_bytes=vmem_limit),
        cost_estimate=pl.CostEstimate(flops=flops, transcendentals=0,
                                      bytes_accessed=bytes_accessed),
    )(xs_strips, cf_strips, fa_strips, w1m, b1t, w2m, b2t)

    out_nhwc = out_strips.reshape(B, H, W, C)
    return jnp.transpose(out_nhwc, (0, 3, 1, 2))


# ----------------------------------------------------------------------------
# Pure-JAX reference (independent lax.conv implementation for validation)
# ----------------------------------------------------------------------------
def forward_reference(feat_nchw, tar_size, params):
    w1, b1, w2, b2, fcw = params
    B, C, H, W = feat_nchw.shape
    rel_coord, rs0, rs1 = rel_coord_scale((H, W), tar_size)
    rel_coord = jnp.broadcast_to(rel_coord[None], (B, H, W, 2))
    rel_scale = jnp.broadcast_to(jnp.array([rs0, rs1], jnp.float32),
                                 (B, H, W, 2))
    x_nhwc = jnp.transpose(feat_nchw, (0, 2, 3, 1))

    def conv(x, w, b):
        y = jax.lax.conv_general_dilated(
            x, w, (1, 1), "SAME",
            dimension_numbers=("NHWC", "HWIO", "NHWC"),
            precision=jax.lax.Precision.HIGHEST)
        return y + b.reshape(1, 1, 1, C)

    res = conv(x_nhwc, w1, b1)
    cfac = rel_coord[..., jnp.arange(C) % 2]
    x = res * cfac + jnp.matmul(rel_scale, fcw,
                                precision=jax.lax.Precision.HIGHEST)
    x = conv(x, w2, b2)
    return jnp.transpose(res + x, (0, 3, 1, 2))


if __name__ == "__main__":
    B, C, H, W = 2, 8, 16, 16          # n_feats=8 (even); W*C = 128 lanes
    tar_size = (8, 8)

    key = jax.random.PRNGKey(0)
    kf, k1, k2, k3, k4, k5 = jax.random.split(key, 6)
    feat = jax.random.normal(kf, (B, C, H, W), jnp.float32)     # NCHW input

    s_conv = 1.0 / math.sqrt(9 * C)
    # conv weights stored [ky, kx, Cin, Cout]; biases [C]
    w1 = jax.random.normal(k1, (3, 3, C, C), jnp.float32) * s_conv
    b1 = jax.random.normal(k2, (C,), jnp.float32) * 0.1
    w2 = jax.random.normal(k3, (3, 3, C, C), jnp.float32) * s_conv
    b2 = jax.random.normal(k4, (C,), jnp.float32) * 0.1
    # fc = nn.Linear(2, C, bias=False), stored pre-transposed as [2, C]
    fcw = jax.random.normal(k5, (2, C), jnp.float32) * (1.0 / math.sqrt(2.0))
    params = (w1, b1, w2, b2, fcw)

    out = feat_enhance(feat, params, tar_size=tar_size, strip=8)
    out = jax.block_until_ready(out)

    ref = forward_reference(feat, tar_size, params)
    err = float(jnp.max(jnp.abs(out - ref)))

    assert out.shape == (B, C, H, W)
    assert bool(jnp.all(jnp.isfinite(out)))
    # 100x tighter than before; margin covers MXU f32 multi-pass vs HIGHEST conv.
    assert err < 1e-3, f"max abs err too large: {err}"
    print("KERNEL_OK")
</pallas_src>

<mosaic_0001>
module attributes {stable_mosaic.version = 11 : i64} {
  func.func @_feat_enhance_kernel(%arg0: i32, %arg1: i32, %arg2: memref<1x1x12x160xf32, #tpu.memory_space<vmem>>, %arg3: memref<1x10x144xf32, #tpu.memory_space<vmem>>, %arg4: memref<1x10x144xf32, #tpu.memory_space<vmem>>, %arg5: memref<3x160x144xf32, #tpu.memory_space<vmem>>, %arg6: memref<1x144xf32, #tpu.memory_space<vmem>>, %arg7: memref<3x144x128xf32, #tpu.memory_space<vmem>>, %arg8: memref<1x128xf32, #tpu.memory_space<vmem>>, %arg9: memref<1x1x8x128xf32, #tpu.memory_space<vmem>>) attributes {dimension_semantics = [#tpu.dimension_semantics<parallel>, #tpu.dimension_semantics<parallel>], iteration_bounds = array<i64: 2, 2>, scalar_prefetch = 0 : i64, scratch_operands = 0 : i64, tpu.core_type = #tpu.core_type<tc>, window_params = [{transform_indices = @transform_0, window_bounds = array<i64: 1, 1, 12, 160>}, {transform_indices = @transform_1, window_bounds = array<i64: 1, 10, 144>}, {transform_indices = @transform_2, window_bounds = array<i64: 1, 10, 144>}, {pipeline_mode = #tpu.pipeline_mode<synchronous>, transform_indices = @transform_3, window_bounds = array<i64: 3, 160, 144>}, {pipeline_mode = #tpu.pipeline_mode<synchronous>, transform_indices = @transform_4, window_bounds = array<i64: 1, 144>}, {pipeline_mode = #tpu.pipeline_mode<synchronous>, transform_indices = @transform_5, window_bounds = array<i64: 3, 144, 128>}, {pipeline_mode = #tpu.pipeline_mode<synchronous>, transform_indices = @transform_6, window_bounds = array<i64: 1, 128>}, {transform_indices = @transform_7, window_bounds = array<i64: 1, 1, 8, 128>}]} {
    %c0 = arith.constant 0 : index
    %c0_0 = arith.constant 0 : index
    %c0_1 = arith.constant 0 : index
    %c0_2 = arith.constant 0 : index
    %0 = vector.load %arg2[%c0, %c0_0, %c0_1, %c0_2] : memref<1x1x12x160xf32, #tpu.memory_space<vmem>>, vector<1x1x12x160xf32>
    %1 = vector.shape_cast %0 : vector<1x1x12x160xf32> to vector<12x160xf32>
    %cst = arith.constant 0.000000e+00 : f32
    %2 = vector.broadcast %cst : f32 to vector<10x144xf32>
    %3 = vector.extract_strided_slice %1 {offsets = [0, 0], sizes = [10, 160], strides = [1, 1]} : vector<12x160xf32> to vector<10x160xf32>
    %c0_3 = arith.constant 0 : index
    %c0_4 = arith.constant 0 : index
    %c0_5 = arith.constant 0 : index
    %4 = vector.load %arg5[%c0_3, %c0_4, %c0_5] : memref<3x160x144xf32, #tpu.memory_space<vmem>>, vector<1x160x144xf32>
    %5 = vector.shape_cast %4 : vector<1x160x144xf32> to vector<160x144xf32>
    %cst_6 = arith.constant dense<0.000000e+00> : vector<10x144xf32>
    %6 = tpu.matmul %3, %5, %cst_6 {dimension_numbers = #tpu.dot_dimension_numbers<[1], [0], [0], [1], [0, 0, 1, 1], [], []>} : vector<10x160xf32>, vector<160x144xf32>, vector<10x144xf32> -> vector<10x144xf32>
    %7 = arith.addf %2, %6 : vector<10x144xf32>
    %8 = vector.extract_strided_slice %1 {offsets = [1, 0], sizes = [10, 160], strides = [1, 1]} : vector<12x160xf32> to vector<10x160xf32>
    %c1 = arith.constant 1 : index
    %c0_7 = arith.constant 0 : index
    %c0_8 = arith.constant 0 : index
    %9 = vector.load %arg5[%c1, %c0_7, %c0_8] : memref<3x160x144xf32, #tpu.memory_space<vmem>>, vector<1x160x144xf32>
    %10 = vector.shape_cast %9 : vector<1x160x144xf32> to vector<160x144xf32>
    %cst_9 = arith.constant dense<0.000000e+00> : vector<10x144xf32>
    %11 = tpu.matmul %8, %10, %cst_9 {dimension_numbers = #tpu.dot_dimension_numbers<[1], [0], [0], [1], [0, 0, 1, 1], [], []>} : vector<10x160xf32>, vector<160x144xf32>, vector<10x144xf32> -> vector<10x144xf32>
    %12 = arith.addf %7, %11 : vector<10x144xf32>
    %13 = vector.extract_strided_slice %1 {offsets = [2, 0], sizes = [10, 160], strides = [1, 1]} : vector<12x160xf32> to vector<10x160xf32>
    %c2 = arith.constant 2 : index
    %c0_10 = arith.constant 0 : index
    %c0_11 = arith.constant 0 : index
    %14 = vector.load %arg5[%c2, %c0_10, %c0_11] : memref<3x160x144xf32, #tpu.memory_space<vmem>>, vector<1x160x144xf32>
    %15 = vector.shape_cast %14 : vector<1x160x144xf32> to vector<160x144xf32>
    %cst_12 = arith.constant dense<0.000000e+00> : vector<10x144xf32>
    %16 = tpu.matmul %13, %15, %cst_12 {dimension_numbers = #tpu.dot_dimension_numbers<[1], [0], [0], [1], [0, 0, 1, 1], [], []>} : vector<10x160xf32>, vector<160x144xf32>, vector<10x144xf32> -> vector<10x144xf32>
    %17 = arith.addf %12, %16 : vector<10x144xf32>
    %c0_13 = arith.constant 0 : index
    %c0_14 = arith.constant 0 : index
    %18 = vector.load %arg6[%c0_13, %c0_14] : memref<1x144xf32, #tpu.memory_space<vmem>>, vector<1x144xf32>
    %19 = vector.broadcast %18 : vector<1x144xf32> to vector<10x144xf32>
    %20 = arith.addf %17, %19 : vector<10x144xf32>
    %c0_15 = arith.constant 0 : index
    %c0_16 = arith.constant 0 : index
    %c0_17 = arith.constant 0 : index
    %21 = vector.load %arg3[%c0_15, %c0_16, %c0_17] : memref<1x10x144xf32, #tpu.memory_space<vmem>>, vector<1x10x144xf32>
    %22 = vector.shape_cast %21 : vector<1x10x144xf32> to vector<10x144xf32>
    %23 = arith.mulf %20, %22 : vector<10x144xf32>
    %c0_18 = arith.constant 0 : index
    %c0_19 = arith.constant 0 : index
    %c0_20 = arith.constant 0 : index
    %24 = vector.load %arg4[%c0_18, %c0_19, %c0_20] : memref<1x10x144xf32, #tpu.memory_space<vmem>>, vector<1x10x144xf32>
    %25 = vector.shape_cast %24 : vector<1x10x144xf32> to vector<10x144xf32>
    %26 = arith.addf %23, %25 : vector<10x144xf32>
    %cst_21 = arith.constant 0.000000e+00 : f32
    %27 = vector.broadcast %cst_21 : f32 to vector<8x128xf32>
    %28 = vector.extract_strided_slice %26 {offsets = [0, 0], sizes = [8, 144], strides = [1, 1]} : vector<10x144xf32> to vector<8x144xf32>
    %c0_22 = arith.constant 0 : index
    %c0_23 = arith.constant 0 : index
    %c0_24 = arith.constant 0 : index
    %29 = vector.load %arg7[%c0_22, %c0_23, %c0_24] : memref<3x144x128xf32, #tpu.memory_space<vmem>>, vector<1x144x128xf32>
    %30 = vector.shape_cast %29 : vector<1x144x128xf32> to vector<144x128xf32>
    %cst_25 = arith.constant dense<0.000000e+00> : vector<8x128xf32>
    %31 = tpu.matmul %28, %30, %cst_25 {dimension_numbers = #tpu.dot_dimension_numbers<[1], [0], [0], [1], [0, 0, 1, 1], [], []>} : vector<8x144xf32>, vector<144x128xf32>, vector<8x128xf32> -> vector<8x128xf32>
    %32 = arith.addf %27, %31 : vector<8x128xf32>
    %33 = vector.extract_strided_slice %26 {offsets = [1, 0], sizes = [8, 144], strides = [1, 1]} : vector<10x144xf32> to vector<8x144xf32>
    %c1_26 = arith.constant 1 : index
    %c0_27 = arith.constant 0 : index
    %c0_28 = arith.constant 0 : index
    %34 = vector.load %arg7[%c1_26, %c0_27, %c0_28] : memref<3x144x128xf32, #tpu.memory_space<vmem>>, vector<1x144x128xf32>
    %35 = vector.shape_cast %34 : vector<1x144x128xf32> to vector<144x128xf32>
    %cst_29 = arith.constant dense<0.000000e+00> : vector<8x128xf32>
    %36 = tpu.matmul %33, %35, %cst_29 {dimension_numbers = #tpu.dot_dimension_numbers<[1], [0], [0], [1], [0, 0, 1, 1], [], []>} : vector<8x144xf32>, vector<144x128xf32>, vector<8x128xf32> -> vector<8x128xf32>
    %37 = arith.addf %32, %36 : vector<8x128xf32>
    %38 = vector.extract_strided_slice %26 {offsets = [2, 0], sizes = [8, 144], strides = [1, 1]} : vector<10x144xf32> to vector<8x144xf32>
    %c2_30 = arith.constant 2 : index
    %c0_31 = arith.constant 0 : index
    %c0_32 = arith.constant 0 : index
    %39 = vector.load %arg7[%c2_30, %c0_31, %c0_32] : memref<3x144x128xf32, #tpu.memory_space<vmem>>, vector<1x144x128xf32>
    %40 = vector.shape_cast %39 : vector<1x144x128xf32> to vector<144x128xf32>
    %cst_33 = arith.constant dense<0.000000e+00> : vector<8x128xf32>
    %41 = tpu.matmul %38, %40, %cst_33 {dimension_numbers = #tpu.dot_dimension_numbers<[1], [0], [0], [1], [0, 0, 1, 1], [], []>} : vector<8x144xf32>, vector<144x128xf32>, vector<8x128xf32> -> vector<8x128xf32>
    %42 = arith.addf %37, %41 : vector<8x128xf32>
    %c0_34 = arith.constant 0 : index
    %c0_35 = arith.constant 0 : index
    %43 = vector.load %arg8[%c0_34, %c0_35] : memref<1x128xf32, #tpu.memory_space<vmem>>, vector<1x128xf32>
    %44 = vector.broadcast %43 : vector<1x128xf32> to vector<8x128xf32>
    %45 = arith.addf %42, %44 : vector<8x128xf32>
    %46 = vector.extract_strided_slice %20 {offsets = [1, 8], sizes = [8, 128], strides = [1, 1]} : vector<10x144xf32> to vector<8x128xf32>
    %47 = arith.addf %46, %45 : vector<8x128xf32>
    %c0_36 = arith.constant 0 : index
    %c0_37 = arith.constant 0 : index
    %c0_38 = arith.constant 0 : index
    %c0_39 = arith.constant 0 : index
    %48 = vector.load %arg9[%c0_36, %c0_37, %c0_38, %c0_39] : memref<1x1x8x128xf32, #tpu.memory_space<vmem>>, vector<1x1x8x128xf32>
    %49 = vector.shape_cast %48 : vector<1x1x8x128xf32> to vector<8x128xf32>
    %50 = vector.shape_cast %47 : vector<8x128xf32> to vector<1x1x8x128xf32>
    tpu.vector_store %arg9[%c0_36, %c0_37, %c0_38, %c0_39], %50 {strides = array<i32>} : memref<1x1x8x128xf32, #tpu.memory_space<vmem>>, vector<1x1x8x128xf32>,
    return
  }
  func.func @transform_0(%arg0: i32, %arg1: i32) -> (i32, i32, i32, i32) {
    %c0_i32 = arith.constant 0 : i32
    %c0_i32_0 = arith.constant 0 : i32
    %c0_i32_1 = arith.constant 0 : i32
    return %arg0, %arg1, %c0_i32, %c0_i32_0 : i32, i32, i32, i32
  }
  func.func @transform_1(%arg0: i32, %arg1: i32) -> (i32, i32, i32) {
    %c0_i32 = arith.constant 0 : i32
    %c0_i32_0 = arith.constant 0 : i32
    %c0_i32_1 = arith.constant 0 : i32
    return %arg1, %c0_i32, %c0_i32_0 : i32, i32, i32
  }
  func.func @transform_2(%arg0: i32, %arg1: i32) -> (i32, i32, i32) {
    %c0_i32 = arith.constant 0 : i32
    %c0_i32_0 = arith.constant 0 : i32
    %c0_i32_1 = arith.constant 0 : i32
    return %arg1, %c0_i32, %c0_i32_0 : i32, i32, i32
  }
  func.func @transform_3(%arg0: i32, %arg1: i32) -> (i32, i32, i32) {
    %c0_i32 = arith.constant 0 : i32
    %c0_i32_0 = arith.constant 0 : i32
    %c0_i32_1 = arith.constant 0 : i32
    %c0_i32_2 = arith.constant 0 : i32
    return %c0_i32, %c0_i32_0, %c0_i32_1 : i32, i32, i32
  }
  func.func @transform_4(%arg0: i32, %arg1: i32) -> (i32, i32) {
    %c0_i32 = arith.constant 0 : i32
    %c0_i32_0 = arith.constant 0 : i32
    %c0_i32_1 = arith.constant 0 : i32
    return %c0_i32, %c0_i32_0 : i32, i32
  }
  func.func @transform_5(%arg0: i32, %arg1: i32) -> (i32, i32, i32) {
    %c0_i32 = arith.constant 0 : i32
    %c0_i32_0 = arith.constant 0 : i32
    %c0_i32_1 = arith.constant 0 : i32
    %c0_i32_2 = arith.constant 0 : i32
    return %c0_i32, %c0_i32_0, %c0_i32_1 : i32, i32, i32
  }
  func.func @transform_6(%arg0: i32, %arg1: i32) -> (i32, i32) {
    %c0_i32 = arith.constant 0 : i32
    %c0_i32_0 = arith.constant 0 : i32
    %c0_i32_1 = arith.constant 0 : i32
    return %c0_i32, %c0_i32_0 : i32, i32
  }
  func.func @transform_7(%arg0: i32, %arg1: i32) -> (i32, i32, i32, i32) {
    %c0_i32 = arith.constant 0 : i32
    %c0_i32_0 = arith.constant 0 : i32
    %c0_i32_1 = arith.constant 0 : i32
    return %arg0, %arg1, %c0_i32, %c0_i32_0 : i32, i32, i32, i32
  }
}

</mosaic_0001>

<llo_original>
// kernel: tile.24
$region0: #{tile.24}
  %s0 = inlined_call_operand.vmem [shape: f32[18,8], index: 0, kind: input, shape index: {}]
  %s1 = inlined_call_operand.vmem [shape: f32[1,144], index: 1, kind: output, shape index: {}]
  $region1: #{tile.24} parent=0
    #allocation0 [shape = 'u8[8192]{0}', space=vmem, size = 0x2000, scoped, tag = 'scoped mem for output reshape']
    %s2 = smov 3
    %v3 = vld [vmem:[%s0] ss:$16 sm:%s2]
    %vm4 = vcmask 64512
    %5 = vst.msk [vmem:[#allocation0] ss:$8 sm:$0x3] %vm4, %v3
    %s6 = scalar_lea.vmem %s0, 15
    %v7 = vld [vmem:[%s6] sm:$0x1]
    %8 = vrot.lane.b32.xlu0 %v7, 120
    %v9 = vpop.permute.xlu0 %8
    %vm10 = vcmask 1048512
    %11 = vst.msk [vmem:[#allocation0] sm:$0x1] %vm10, %v9
    %s12 = scalar_lea.vmem %s0, 14
    %v13 = vld [vmem:[%s12] sm:$0x1]
    %14 = vrot.lane.b32.xlu0 %v13, 112
    %v15 = vpop.permute.xlu0 %14
    %vm16 = vcmask 982912
    %17 = vst.msk [vmem:[#allocation0] sm:$0x1] %vm16, %v15
    %s18 = scalar_lea.vmem %s0, 13
    %v19 = vld [vmem:[%s18] sm:$0x1]
    %20 = vrot.lane.b32.xlu0 %v19, 104
    %v21 = vpop.permute.xlu0 %20
    %vm22 = vcmask 917312
    %23 = vst.msk [vmem:[#allocation0] sm:$0x1] %vm22, %v21
    %s24 = scalar_lea.vmem %s0, 12
    %v25 = vld [vmem:[%s24] sm:$0x1]
    %26 = vrot.lane.b32.xlu0 %v25, 96
    %v27 = vpop.permute.xlu0 %26
    %vm28 = vcmask 851712
    %29 = vst.msk [vmem:[#allocation0] sm:$0x1] %vm28, %v27
    %s30 = scalar_lea.vmem %s0, 11
    %v31 = vld [vmem:[%s30] sm:$0x1]
    %32 = vrot.lane.b32.xlu0 %v31, 88
    %v33 = vpop.permute.xlu0 %32
    %vm34 = vcmask 786112
    %35 = vst.msk [vmem:[#allocation0] sm:$0x1] %vm34, %v33
    %s36 = scalar_lea.vmem %s0, 10
    %v37 = vld [vmem:[%s36] sm:$0x1]
    %38 = vrot.lane.b32.xlu0 %v37, 80
    %v39 = vpop.permute.xlu0 %38
    %vm40 = vcmask 720512
    %41 = vst.msk [vmem:[#allocation0] sm:$0x1] %vm40, %v39
    %s42 = scalar_lea.vmem %s0, 9
    %v43 = vld [vmem:[%s42] sm:$0x1]
    %44 = vrot.lane.b32.xlu0 %v43, 72
    %v45 = vpop.permute.xlu0 %44
    %vm46 = vcmask 654912
    %47 = vst.msk [vmem:[#allocation0] sm:$0x1] %vm46, %v45
    %s48 = scalar_lea.vmem %s0, 8
    %v49 = vld [vmem:[%s48] sm:$0x1]
    %50 = vrot.lane.b32.xlu0 %v49, 64
    %v51 = vpop.permute.xlu0 %50
    %vm52 = vcmask 589312
    %53 = vst.msk [vmem:[#allocation0] sm:$0x1] %vm52, %v51
    %s54 = scalar_lea.vmem %s0, 7
    %v55 = vld [vmem:[%s54] sm:$0x1]
    %56 = vrot.lane.b32.xlu0 %v55, 56
    %v57 = vpop.permute.xlu0 %56
    %vm58 = vcmask 523712
    %59 = vst.msk [vmem:[#allocation0] sm:$0x1] %vm58, %v57
    %s60 = scalar_lea.vmem %s0, 6
    %v61 = vld [vmem:[%s60] sm:$0x1]
    %62 = vrot.lane.b32.xlu0 %v61, 48
    %v63 = vpop.permute.xlu0 %62
    %vm64 = vcmask 458112
    %65 = vst.msk [vmem:[#allocation0] sm:$0x1] %vm64, %v63
    %s66 = scalar_lea.vmem %s0, 5
    %v67 = vld [vmem:[%s66] sm:$0x1]
    %68 = vrot.lane.b32.xlu0 %v67, 40
    %v69 = vpop.permute.xlu0 %68
    %vm70 = vcmask 392512
    %71 = vst.msk [vmem:[#allocation0] sm:$0x1] %vm70, %v69
    %s72 = scalar_lea.vmem %s0, 4
    %v73 = vld [vmem:[%s72] sm:$0x1]
    %74 = vrot.lane.b32.xlu0 %v73, 32
    %v75 = vpop.permute.xlu0 %74
    %vm76 = vcmask 326912
    %77 = vst.msk [vmem:[#allocation0] sm:$0x1] %vm76, %v75
    %s78 = scalar_lea.vmem %s0, 3
    %v79 = vld [vmem:[%s78] sm:$0x1]
    %80 = vrot.lane.b32.xlu0 %v79, 24
    %v81 = vpop.permute.xlu0 %80
    %vm82 = vcmask 261312
    %83 = vst.msk [vmem:[#allocation0] sm:$0x1] %vm82, %v81
    %s84 = scalar_lea.vmem %s0, 2
    %v85 = vld [vmem:[%s84] sm:$0x1]
    %86 = vrot.lane.b32.xlu0 %v85, 16
    %v87 = vpop.permute.xlu0 %86
    %vm88 = vcmask 195712
    %89 = vst.msk [vmem:[#allocation0] sm:$0x1] %vm88, %v87
    %s90 = scalar_lea.vmem %s0, 1
    %s91 = smov 3
    %v92 = vld [vmem:[%s90] ss:$16 sm:%s91]
    %93 = vrot.lane.b32.xlu0 %v92, 8
    %v94 = vpop.permute.xlu0 %93
    %vm95 = vcmask 130112
    %96 = vst.msk [vmem:[#allocation0] ss:$8 sm:$0x3] %vm95, %v94
    %s98 = ssub.s32 2, 1
    %v99 = vld [vmem:[#allocation0] sm:%s98]
    %s101 = ssub.s32 2, 1
    %102 = vst [vmem:[%s1] sm:%s101] %v99
    %s103 = scalar_lea.vmem [#allocation0], 8
    %v104 = vld [vmem:[%s103] sm:%s98]
    %s106 = ssub.s32 2, 1
    %s107 = scalar_lea.vmem %s1, 1
    %108 = vst [vmem:[%s107] sm:%s106] %v104

// kernel: tile.28
$region0: #{tile.28}
  #allocation0 [shape = 's32[1]{0}', space=sflag, size = 0x4, scoped, tag = 'scoped memory for tile.28']
  %s0 = inlined_call_operand.vmem [shape: f32[8], index: 0, kind: input, shape index: {}]
  %s1 = inlined_call_operand.vmem [shape: f32[16,8], index: 1, kind: output, shape index: {}]
  // Predicated region
  $region2: #{tile.28} parent=0 // pred_check
    _
  $region3: #{tile.28} parent=0 // pred_check_branch
    %3 = sbr.rel (0) target = $region5
  $region4: #{tile.28} parent=0 // pred_region
    _
  $region5: #{tile.28} parent=0 // pred_fallthru
    _
  %v4 = vld [vmem:[%s0] ss:$0 sm:$0xff]
  %5 = vst [vmem:[%s1] sm:$0xff] %v4
  %s6 = scalar_lea.vmem %s1, 8
  %7 = vst [vmem:[%s6] sm:$0xff] %v4

// kernel: tile.29
$region0: #{tile.29}
  %s0 = inlined_call_operand.vmem [shape: f32[16,8], index: 0, kind: input, shape index: {}]
  %s1 = inlined_call_operand.vmem [shape: f32[1,128], index: 1, kind: output, shape index: {}]
  $region1: #{tile.29} parent=0
    #allocation0 [shape = 'u8[4096]{0}', space=vmem, size = 0x1000, scoped, tag = 'scoped mem for output reshape']
    %v2 = vld [vmem:[%s0] sm:$0x1]
    %vm3 = vcmask 64512
    %4 = vst.msk [vmem:[#allocation0] sm:$0x1] %vm3, %v2
    %s5 = scalar_lea.vmem %s0, 15
    %v6 = vld [vmem:[%s5] sm:$0x1]
    %7 = vrot.lane.b32.xlu0 %v6, 120
    %v8 = vpop.permute.xlu0 %7
    %vm9 = vcmask 1048512
    %10 = vst.msk [vmem:[#allocation0] sm:$0x1] %vm9, %v8
    %s11 = scalar_lea.vmem %s0, 14
    %v12 = vld [vmem:[%s11] sm:$0x1]
    %13 = vrot.lane.b32.xlu0 %v12, 112
    %v14 = vpop.permute.xlu0 %13
    %vm15 = vcmask 982912
    %16 = vst.msk [vmem:[#allocation0] sm:$0x1] %vm15, %v14
    %s17 = scalar_lea.vmem %s0, 13
    %v18 = vld [vmem:[%s17] sm:$0x1]
    %19 = vrot.lane.b32.xlu0 %v18, 104
    %v20 = vpop.permute.xlu0 %19
    %vm21 = vcmask 917312
    %22 = vst.msk [vmem:[#allocation0] sm:$0x1] %vm21, %v20
    %s23 = scalar_lea.vmem %s0, 12
    %v24 = vld [vmem:[%s23] sm:$0x1]
    %25 = vrot.lane.b32.xlu0 %v24, 96
    %v26 = vpop.permute.xlu0 %25
    %vm27 = vcmask 851712
    %28 = vst.msk [vmem:[#allocation0] sm:$0x1] %vm27, %v26
    %s29 = scalar_lea.vmem %s0, 11
    %v30 = vld [vmem:[%s29] sm:$0x1]
    %31 = vrot.lane.b32.xlu0 %v30, 88
    %v32 = vpop.permute.xlu0 %31
    %vm33 = vcmask 786112
    %34 = vst.msk [vmem:[#allocation0] sm:$0x1] %vm33, %v32
    %s35 = scalar_lea.vmem %s0, 10
    %v36 = vld [vmem:[%s35] sm:$0x1]
    %37 = vrot.lane.b32.xlu0 %v36, 80
    %v38 = vpop.permute.xlu0 %37
    %vm39 = vcmask 720512
    %40 = vst.msk [vmem:[#allocation0] sm:$0x1] %vm39, %v38
    %s41 = scalar_lea.vmem %s0, 9
    %v42 = vld [vmem:[%s41] sm:$0x1]
    %43 = vrot.lane.b32.xlu0 %v42, 72
    %v44 = vpop.permute.xlu0 %43
    %vm45 = vcmask 654912
    %46 = vst.msk [vmem:[#allocation0] sm:$0x1] %vm45, %v44
    %s47 = scalar_lea.vmem %s0, 8
    %v48 = vld [vmem:[%s47] sm:$0x1]
    %49 = vrot.lane.b32.xlu0 %v48, 64
    %v50 = vpop.permute.xlu0 %49
    %vm51 = vcmask 589312
    %52 = vst.msk [vmem:[#allocation0] sm:$0x1] %vm51, %v50
    %s53 = scalar_lea.vmem %s0, 7
    %v54 = vld [vmem:[%s53] sm:$0x1]
    %55 = vrot.lane.b32.xlu0 %v54, 56
    %v56 = vpop.permute.xlu0 %55
    %vm57 = vcmask 523712
    %58 = vst.msk [vmem:[#allocation0] sm:$0x1] %vm57, %v56
    %s59 = scalar_lea.vmem %s0, 6
    %v60 = vld [vmem:[%s59] sm:$0x1]
    %61 = vrot.lane.b32.xlu0 %v60, 48
    %v62 = vpop.permute.xlu0 %61
    %vm63 = vcmask 458112
    %64 = vst.msk [vmem:[#allocation0] sm:$0x1] %vm63, %v62
    %s65 = scalar_lea.vmem %s0, 5
    %v66 = vld [vmem:[%s65] sm:$0x1]
    %67 = vrot.lane.b32.xlu0 %v66, 40
    %v68 = vpop.permute.xlu0 %67
    %vm69 = vcmask 392512
    %70 = vst.msk [vmem:[#allocation0] sm:$0x1] %vm69, %v68
    %s71 = scalar_lea.vmem %s0, 4
    %v72 = vld [vmem:[%s71] sm:$0x1]
    %73 = vrot.lane.b32.xlu0 %v72, 32
    %v74 = vpop.permute.xlu0 %73
    %vm75 = vcmask 326912
    %76 = vst.msk [vmem:[#allocation0] sm:$0x1] %vm75, %v74
    %s77 = scalar_lea.vmem %s0, 3
    %v78 = vld [vmem:[%s77] sm:$0x1]
    %79 = vrot.lane.b32.xlu0 %v78, 24
    %v80 = vpop.permute.xlu0 %79
    %vm81 = vcmask 261312
    %82 = vst.msk [vmem:[#allocation0] sm:$0x1] %vm81, %v80
    %s83 = scalar_lea.vmem %s0, 2
    %v84 = vld [vmem:[%s83] sm:$0x1]
    %85 = vrot.lane.b32.xlu0 %v84, 16
    %v86 = vpop.permute.xlu0 %85
    %vm87 = vcmask 195712
    %88 = vst.msk [vmem:[#allocation0] sm:$0x1] %vm87, %v86
    %s89 = scalar_lea.vmem %s0, 1
    %v90 = vld [vmem:[%s89] sm:$0x1]
    %91 = vrot.lane.b32.xlu0 %v90, 8
    %v92 = vpop.permute.xlu0 %91
    %vm93 = vcmask 130112
    %94 = vst.msk [vmem:[#allocation0] sm:$0x1] %vm93, %v92
    %s96 = ssub.s32 2, 1
    %v97 = vld [vmem:[#allocation0] sm:%s96]
    %s99 = ssub.s32 2, 1
    %100 = vst [vmem:[%s1] sm:%s99] %v97

// kernel: feat_enhance.1
$region0: #{feat_enhance.1}
  #allocation0 [shape = 'u32[]', space=smem, size = 0x4, offset = 0x4, fixed_abs, tag = 'smem constant byte address 0x4 - core index']
  #allocation1 [shape = 'u32[72,128]{1,0:T(1,128)}', space=vmem, size = 0x9000, scoped, tag = 'internal scratch']
  %s0 = inlined_call_operand.vmem [shape: f32[2,2,12,160], index: 0, kind: input, shape index: {}]
  %s1 = inlined_call_operand.vmem [shape: f32[2,10,144], index: 1, kind: input, shape index: {}]
  %s2 = inlined_call_operand.vmem [shape: f32[2,10,144], index: 2, kind: input, shape index: {}]
  %s3 = inlined_call_operand.vmem [shape: f32[3,160,144], index: 3, kind: input, shape index: {}]
  %s4 = inlined_call_operand.vmem [shape: f32[1,144], index: 4, kind: input, shape index: {}]
  %s5 = inlined_call_operand.vmem [shape: f32[3,144,128], index: 5, kind: input, shape index: {}]
  %s6 = inlined_call_operand.vmem [shape: f32[1,128], index: 6, kind: input, shape index: {}]
  %s7 = inlined_call_operand.vmem [shape: f32[2,2,8,128], index: 7, kind: output, shape index: {}]
  %s8 = sld [smem:[#allocation0]]
  $region61: #{feat_enhance.1} parent=0
    _
  %s10 = ssub.s32 1, %s8
  %s11 = scalar_select 0, %s10, %s8
  loop: start=0, step=1, limit=6
  $region2: #{feat_enhance.1} parent=0 // loop_pre_header
    _
  $region3: #{feat_enhance.1} parent=0 // loop_header
    %s13 = sphi 0, %s17
    %p14 = scmp.ge.s32.totalorder %s13, 6
    %s20 = sphi 0, %s32
    %s21 = sphi 0, %s28
    %s22 = sphi 0, %s20
    %s23 = sphi 0, %s21
    %s24 = sphi 0, %s22
    %s25 = sphi 0, %s23
    %s37 = sphi 0, %s39
    %s40 = sphi 0, %s37
    %s41 = sphi 0, %s40
    %s57 = sphi 0, %s41
    %s63 = sphi 0, %s65
    %s66 = sphi 0, %s63
    %s67 = sphi 0, %s66
    %s83 = sphi 0, %s67
    %s89 = sphi 0, %s91
    %s92 = sphi 0, %s89
    %s93 = sphi 0, %s92
    %s109 = sphi 0, %s93
    %s113 = sphi 0, %s113
    %s115 = sphi 0, %s113
    %s116 = sphi 0, %s115
    %s130 = sphi 0, %s116
    %s134 = sphi 0, %s134
    %s136 = sphi 0, %s134
    %s137 = sphi 0, %s136
    %s151 = sphi 0, %s137
    %s155 = sphi 0, %s155
    %s157 = sphi 0, %s155
    %s158 = sphi 0, %s157
    %s172 = sphi 0, %s158
    %s176 = sphi 0, %s176
    %s178 = sphi 0, %s176
    %s179 = sphi 0, %s178
    %s193 = sphi 0, %s179
    %s201 = sphi 0, %s203
    %s204 = sphi 0, %s201
    %s205 = sphi 0, %s204
    %s221 = sphi 0, %s205
  $region4: #{feat_enhance.1} parent=0 // loop_header_branch
    %16 = sbr.rel (%p14) target = $region8
  $region5: #{feat_enhance.1} parent=0 // loop_body
    %s18 = ssub.s32 %s13, 1
    %s19 = ssub.s32 %s13, 2
    %s26 = sadd.s32 1, %s21
    %p27 = scmp.ge.s32.totalorder %s26, 2
    %s28 = scalar_select %p27, 0, %s26
    %s29 = sadd.s32 1, %s20
    %s30 = scalar_select %p27, %s29, %s20
    %p31 = scmp.ge.s32.totalorder %s30, 2
    %s32 = scalar_select %p31, 0, %s30
    %s33 = ssub.s32 %s20, %s32
    %s34 = ssub.s32 %s21, %s28
    %s35 = sor.u32 %s33, %s34
    %p36 = scmp.eq.s32.totalorder %s35, 0
    %s38 = sadd.s32 %s37, 1
    %s39 = scalar_select %p36, %s37, %s38
    %p42 = pneg %p36
    %p43 = scmp.eq.s32.totalorder %s13, 3
    %p44 = por %p42, %p43
    %p45 = scmp.ne.s32.totalorder %s37, %s40
    %p46 = scmp.eq.s32.totalorder %s13, 0
    %p47 = por %p45, %p46
    %p48 = scmp.ne.s32.totalorder %s37, %s40
    %p49 = scmp.eq.s32.totalorder %s18, 3
    %p50 = por %p48, %p49
    %p51 = scmp.ne.s32.totalorder %s40, %s41
    %p52 = scmp.eq.s32.totalorder %s18, 0
    %p53 = por %p51, %p52
    %p54 = scmp.ne.s32.totalorder %s40, %s41
    %p55 = scmp.eq.s32.totalorder %s19, 3
    %p56 = por %p54, %p55
    %p58 = scmp.ne.s32.totalorder %s41, %s57
    %p59 = scmp.eq.s32.totalorder %s19, 0
    %p60 = por %p58, %p59
    %s61 = ssub.s32 %s21, %s28
    %p62 = scmp.eq.s32.totalorder %s61, 0
    %s64 = sadd.s32 %s63, 1
    %s65 = scalar_select %p62, %s63, %s64
    %p68 = pneg %p62
    %p69 = scmp.eq.s32.totalorder %s13, 3
    %p70 = por %p68, %p69
    %p71 = scmp.ne.s32.totalorder %s63, %s66
    %p72 = scmp.eq.s32.totalorder %s13, 0
    %p73 = por %p71, %p72
    %p74 = scmp.ne.s32.totalorder %s63, %s66
    %p75 = scmp.eq.s32.totalorder %s18, 3
    %p76 = por %p74, %p75
    %p77 = scmp.ne.s32.totalorder %s66, %s67
    %p78 = scmp.eq.s32.totalorder %s18, 0
    %p79 = por %p77, %p78
    %p80 = scmp.ne.s32.totalorder %s66, %s67
    %p81 = scmp.eq.s32.totalorder %s19, 3
    %p82 = por %p80, %p81
    %p84 = scmp.ne.s32.totalorder %s67, %s83
    %p85 = scmp.eq.s32.totalorder %s19, 0
    %p86 = por %p84, %p85
    %s87 = ssub.s32 %s21, %s28
    %p88 = scmp.eq.s32.totalorder %s87, 0
    %s90 = sadd.s32 %s89, 1
    %s91 = scalar_select %p88, %s89, %s90
    %p94 = pneg %p88
    %p95 = scmp.eq.s32.totalorder %s13, 3
    %p96 = por %p94, %p95
    %p97 = scmp.ne.s32.totalorder %s89, %s92
    %p98 = scmp.eq.s32.totalorder %s13, 0
    %p99 = por %p97, %p98
    %p100 = scmp.ne.s32.totalorder %s89, %s92
    %p101 = scmp.eq.s32.totalorder %s18, 3
    %p102 = por %p100, %p101
    %p103 = scmp.ne.s32.totalorder %s92, %s93
    %p104 = scmp.eq.s32.totalorder %s18, 0
    %p105 = por %p103, %p104
    %p106 = scmp.ne.s32.totalorder %s92, %s93
    %p107 = scmp.eq.s32.totalorder %s19, 3
    %p108 = por %p106, %p107
    %p110 = scmp.ne.s32.totalorder %s93, %s109
    %p111 = scmp.eq.s32.totalorder %s19, 0
    %p112 = por %p110, %p111
    %s114 = sadd.s32 %s113, 1
    %p117 = scmp.eq.s32.totalorder %s13, 3
    %p118 = scmp.ne.s32.totalorder %s113, %s115
    %p119 = scmp.eq.s32.totalorder %s13, 0
    %p120 = por %p118, %p119
    %p121 = scmp.ne.s32.totalorder %s113, %s115
    %p122 = scmp.eq.s32.totalorder %s18, 3
    %p123 = por %p121, %p122
    %p124 = scmp.ne.s32.totalorder %s115, %s116
    %p125 = scmp.eq.s32.totalorder %s18, 0
    %p126 = por %p124, %p125
    %p127 = scmp.ne.s32.totalorder %s115, %s116
    %p128 = scmp.eq.s32.totalorder %s19, 3
    %p129 = por %p127, %p128
    %p131 = scmp.ne.s32.totalorder %s116, %s130
    %p132 = scmp.eq.s32.totalorder %s19, 0
    %p133 = por %p131, %p132
    %s135 = sadd.s32 %s134, 1
    %p138 = scmp.eq.s32.totalorder %s13, 3
    %p139 = scmp.ne.s32.totalorder %s134, %s136
    %p140 = scmp.eq.s32.totalorder %s13, 0
    %p141 = por %p139, %p140
    %p142 = scmp.ne.s32.totalorder %s134, %s136
    %p143 = scmp.eq.s32.totalorder %s18, 3
    %p144 = por %p142, %p143
    %p145 = scmp.ne.s32.totalorder %s136, %s137
    %p146 = scmp.eq.s32.totalorder %s18, 0
    %p147 = por %p145, %p146
    %p148 = scmp.ne.s32.totalorder %s136, %s137
    %p149 = scmp.eq.s32.totalorder %s19, 3
    %p150 = por %p148, %p149
    %p152 = scmp.ne.s32.totalorder %s137, %s151
    %p153 = scmp.eq.s32.totalorder %s19, 0
    %p154 = por %p152, %p153
    %s156 = sadd.s32 %s155, 1
    %p159 = scmp.eq.s32.totalorder %s13, 3
    %p160 = scmp.ne.s32.totalorder %s155, %s157
    %p161 = scmp.eq.s32.totalorder %s13, 0
    %p162 = por %p160, %p161
    %p163 = scmp.ne.s32.totalorder %s155, %s157
    %p164 = scmp.eq.s32.totalorder %s18, 3
    %p165 = por %p163, %p164
    %p166 = scmp.ne.s32.totalorder %s157, %s158
    %p167 = scmp.eq.s32.totalorder %s18, 0
    %p168 = por %p166, %p167
    %p169 = scmp.ne.s32.totalorder %s157, %s158
    %p170 = scmp.eq.s32.totalorder %s19, 3
    %p171 = por %p169, %p170
    %p173 = scmp.ne.s32.totalorder %s158, %s172
    %p174 = scmp.eq.s32.totalorder %s19, 0
    %p175 = por %p173, %p174
    %s177 = sadd.s32 %s176, 1
    %p180 = scmp.eq.s32.totalorder %s13, 3
    %p181 = scmp.ne.s32.totalorder %s176, %s178
    %p182 = scmp.eq.s32.totalorder %s13, 0
    %p183 = por %p181, %p182
    %p184 = scmp.ne.s32.totalorder %s176, %s178
    %p185 = scmp.eq.s32.totalorder %s18, 3
    %p186 = por %p184, %p185
    %p187 = scmp.ne.s32.totalorder %s178, %s179
    %p188 = scmp.eq.s32.totalorder %s18, 0
    %p189 = por %p187, %p188
    %p190 = scmp.ne.s32.totalorder %s178, %s179
    %p191 = scmp.eq.s32.totalorder %s19, 3
    %p192 = por %p190, %p191
    %p194 = scmp.ne.s32.totalorder %s179, %s193
    %p195 = scmp.eq.s32.totalorder %s19, 0
    %p196 = por %p194, %p195
    %s197 = ssub.s32 %s20, %s32
    %s198 = ssub.s32 %s21, %s28
    %s199 = sor.u32 %s197, %s198
    %p200 = scmp.eq.s32.totalorder %s199, 0
    %s202 = sadd.s32 %s201, 1
    %s203 = scalar_select %p200, %s201, %s202
    %p206 = pneg %p200
    %p207 = scmp.eq.s32.totalorder %s13, 3
    %p208 = por %p206, %p207
    %p209 = scmp.ne.s32.totalorder %s201, %s204
    %p210 = scmp.eq.s32.totalorder %s13, 0
    %p211 = por %p209, %p210
    %p212 = scmp.ne.s32.totalorder %s201, %s204
    %p213 = scmp.eq.s32.totalorder %s18, 3
    %p214 = por %p212, %p213
    %p215 = scmp.ne.s32.totalorder %s204, %s205
    %p216 = scmp.eq.s32.totalorder %s18, 0
    %p217 = por %p215, %p216
    %p218 = scmp.ne.s32.totalorder %s204, %s205
    %p219 = scmp.eq.s32.totalorder %s19, 3
    %p220 = por %p218, %p219
    %p222 = scmp.ne.s32.totalorder %s205, %s221
    %p223 = scmp.eq.s32.totalorder %s19, 0
    %p224 = por %p222, %p223
    %p225 = scmp.le.s32.totalorder 1, %s13
    %p226 = scmp.lt.s32.totalorder %s13, 5
    %p227 = pnand %p225, %p226
    %p228 = pneg %p227
    // Predicated region
    $region9: #{feat_enhance.1} parent=5 // pred_check
      _
    $region10: #{feat_enhance.1} parent=5 // pred_check_branch
      %230 = sbr.rel (%p227) target = $region12
    $region11: #{feat_enhance.1} parent=5 // pred_region
      %s231 = ssub.s32 %s13, 1
      // Predicated region
      $region13: #{feat_enhance.1} parent=11 // pred_check
        %p232 = pneg %p126
      $region14: #{feat_enhance.1} parent=11 // pred_check_branch
        %234 = sbr.rel (%p232) target = $region16
      $region15: #{feat_enhance.1} parent=11 // pred_region
        _
      $region16: #{feat_enhance.1} parent=11 // pred_fallthru
        _
      // Predicated region
      $region17: #{feat_enhance.1} parent=11 // pred_check
        %p235 = pneg %p147
      $region18: #{feat_enhance.1} parent=11 // pred_check_branch
        %237 = sbr.rel (%p235) target = $region20
      $region19: #{feat_enhance.1} parent=11 // pred_region
        _
      $region20: #{feat_enhance.1} parent=11 // pred_fallthru
        _
      // Predicated region
      $region21: #{feat_enhance.1} parent=11 // pred_check
        %p238 = pneg %p168
      $region22: #{feat_enhance.1} parent=11 // pred_check_branch
        %240 = sbr.rel (%p238) target = $region24
      $region23: #{feat_enhance.1} parent=11 // pred_region
        _
      $region24: #{feat_enhance.1} parent=11 // pred_fallthru
        _
      // Predicated region
      $region25: #{feat_enhance.1} parent=11 // pred_check
        %p241 = pneg %p189
      $region26: #{feat_enhance.1} parent=11 // pred_check_branch
        %243 = sbr.rel (%p241) target = $region28
      $region27: #{feat_enhance.1} parent=11 // pred_region
        _
      $region28: #{feat_enhance.1} parent=11 // pred_fallthru
        _
    $region12: #{feat_enhance.1} parent=5 // pred_fallthru
      _
    %p244 = scmp.lt.s32.totalorder %s13, 4
    // Predicated region
    $region29: #{feat_enhance.1} parent=5 // pred_check
      %p245 = pneg %p244
    $region30: #{feat_enhance.1} parent=5 // pred_check_branch
      %247 = sbr.rel (%p245) target = $region32
    $region31: #{feat_enhance.1} parent=5 // pred_region
      // Predicated region
      $region33: #{feat_enhance.1} parent=31 // pred_check
        %p248 = pneg %p47
      $region34: #{feat_enhance.1} parent=31 // pred_check_branch
        %250 = sbr.rel (%p248) target = $region36
      $region35: #{feat_enhance.1} parent=31 // pred_region
        %p251 = scmp.lt.s32.totalorder %s20, 1
        %s252 = scalar_select %p251, %s20, 1
        %p253 = scmp.lt.s32.totalorder %s21, 1
        %s254 = scalar_select %p253, %s21, 1
        %s255 = smul.addr %s254, 4
        %s256 = smul.addr %s252, 8
        %s257 = sadd.s32 %s255, %s256
        %s258 = smul.addr %s257, 8
        %s259 = scalar_lea.vmem %s0, %s258
      $region36: #{feat_enhance.1} parent=31 // pred_fallthru
        _
      // Predicated region
      $region37: #{feat_enhance.1} parent=31 // pred_check
        %p260 = pneg %p73
      $region38: #{feat_enhance.1} parent=31 // pred_check_branch
        %262 = sbr.rel (%p260) target = $region40
      $region39: #{feat_enhance.1} parent=31 // pred_region
        %p263 = scmp.lt.s32.totalorder %s21, 1
        %s264 = scalar_select %p263, %s21, 1
        %s265 = smul.addr %s264, 4
        %s266 = smul.addr %s265, 8
        %s267 = scalar_lea.vmem %s1, %s266
      $region40: #{feat_enhance.1} parent=31 // pred_fallthru
        _
      // Predicated region
      $region41: #{feat_enhance.1} parent=31 // pred_check
        %p268 = pneg %p99
      $region42: #{feat_enhance.1} parent=31 // pred_check_branch
        %270 = sbr.rel (%p268) target = $region44
      $region43: #{feat_enhance.1} parent=31 // pred_region
        %p271 = scmp.lt.s32.totalorder %s21, 1
        %s272 = scalar_select %p271, %s21, 1
        %s273 = smul.addr %s272, 4
        %s274 = smul.addr %s273, 8
        %s275 = scalar_lea.vmem %s2, %s274
      $region44: #{feat_enhance.1} parent=31 // pred_fallthru
        _
    $region32: #{feat_enhance.1} parent=5 // pred_fallthru
      _
    %p276 = scmp.le.s32.totalorder 1, %s13
    %p277 = scmp.lt.s32.totalorder %s13, 5
    %p278 = pnand %p276, %p277
    %p279 = pneg %p278
    // Predicated region
    $region45: #{feat_enhance.1} parent=5 // pred_check
      _
    $region46: #{feat_enhance.1} parent=5 // pred_check_branch
      %281 = sbr.rel (%p278) target = $region48
    $region47: #{feat_enhance.1} parent=5 // pred_region
      %s282 = ssub.s32 %s13, 1
      %p283 = scmp.lt.s32.totalorder %s22, 1
      %s284 = scalar_select %p283, %s22, 1
      %p285 = scmp.lt.s32.totalorder %s23, 1
      %s286 = scalar_select %p285, %s23, 1
      %s287 = smul.addr %s286, 4
      %s288 = smul.addr %s284, 8
      %s289 = sadd.s32 %s287, %s288
      %s290 = smul.addr %s289, 8
      %s291 = scalar_lea.vmem %s0, %s290
      %p292 = pneg %p53
      %p293 = pneg %p50
      %p294 = scmp.lt.s32.totalorder %s23, 1
      %s295 = scalar_select %p294, %s23, 1
      %s296 = smul.addr %s295, 4
      %s297 = smul.addr %s296, 8
      %s298 = scalar_lea.vmem %s1, %s297
      %p299 = pneg %p79
      %p300 = pneg %p76
      %p301 = scmp.lt.s32.totalorder %s23, 1
      %s302 = scalar_select %p301, %s23, 1
      %s303 = smul.addr %s302, 4
      %s304 = smul.addr %s303, 8
      %s305 = scalar_lea.vmem %s2, %s304
      %p306 = pneg %p105
      %p307 = pneg %p102
      %p308 = pneg %p126
      %p309 = pneg %p123
      %p310 = pneg %p147
      %p311 = pneg %p144
      %p312 = pneg %p168
      %p313 = pneg %p165
      %p314 = pneg %p189
      %p315 = pneg %p186
      %p316 = pneg %p217
      %p317 = pneg %p214
      %p318 = scmp.lt.s32.totalorder %s22, 1
      %s319 = scalar_select %p318, %s22, 1
      %p320 = scmp.lt.s32.totalorder %s23, 1
      %s321 = scalar_select %p320, %s23, 1
      %s322 = smul.addr %s319, 2
      %s323 = sadd.s32 %s321, %s322
      %s324 = smul.addr %s323, 8
      %s325 = scalar_lea.vmem %s7, %s324
      %p326 = scmp.lt.s32.totalorder %s22, 1
      %s327 = scalar_select %p326, %s22, 1
      %p328 = scmp.lt.s32.totalorder %s23, 1
      %s329 = scalar_select %p328, %s23, 1
      %s330 = smul.addr %s329, 4
      %s331 = smul.addr %s327, 8
      %s332 = sadd.s32 %s330, %s331
      %s333 = smul.addr %s332, 8
      %s334 = scalar_lea.vmem %s0, %s333
      %p335 = scmp.lt.s32.totalorder %s23, 1
      %s336 = scalar_select %p335, %s23, 1
      %s337 = smul.addr %s336, 4
      %s338 = smul.addr %s337, 8
      %s339 = scalar_lea.vmem %s1, %s338
      %p340 = scmp.lt.s32.totalorder %s23, 1
      %s341 = scalar_select %p340, %s23, 1
      %s342 = smul.addr %s341, 4
      %s343 = smul.addr %s342, 8
      %s344 = scalar_lea.vmem %s2, %s343
      %p345 = scmp.lt.s32.totalorder %s22, 1
      %s346 = scalar_select %p345, %s22, 1
      %p347 = scmp.lt.s32.totalorder %s23, 1
      %s348 = scalar_select %p347, %s23, 1
      %s349 = smul.addr %s346, 2
      %s350 = sadd.s32 %s348, %s349
      %s351 = smul.addr %s350, 8
      %s352 = scalar_lea.vmem %s7, %s351
      %v353 = vld [vmem:[%s334] sm:$0xff]
      %v354 = vld [vmem:[%s334 + $0x8] sm:$0xff]
      %v355 = vld [vmem:[%s334 + $0x10] sm:$0xf]
      %v356 = vld [vmem:[%s334 + $0x18] sm:$0xf]
      %v357 = vld [vmem:[%s3] sm:$0xff]
      %v358 = vld [vmem:[%s3 + $0x8] sm:$0xff]
      %v359 = vld [vmem:[%s3 + $0x10] sm:$0xff]
      %v360 = vld [vmem:[%s3 + $0x18] sm:$0xff]
      %v361 = vld [vmem:[%s3 + $0x20] sm:$0xff]
      %v362 = vld [vmem:[%s3 + $0x28] sm:$0xff]
      %v363 = vld [vmem:[%s3 + $0x30] sm:$0xff]
      %v364 = vld [vmem:[%s3 + $0x38] sm:$0xff]
      %v365 = vld [vmem:[%s3 + $0x40] sm:$0xff]
      %v366 = vld [vmem:[%s3 + $0x48] sm:$0xff]
      %v367 = vld [vmem:[%s3 + $0x50] sm:$0xff]
      %v368 = vld [vmem:[%s3 + $0x58] sm:$0xff]
      %v369 = vld [vmem:[%s3 + $0x60] sm:$0xff]
      %v370 = vld [vmem:[%s3 + $0x68] sm:$0xff]
      %v371 = vld [vmem:[%s3 + $0x70] sm:$0xff]
      %v372 = vld [vmem:[%s3 + $0x78] sm:$0xff]
      %v373 = vld [vmem:[%s3 + $0x80] sm:$0xff]
      %v374 = vld [vmem:[%s3 + $0x88] sm:$0xff]
      %v375 = vld [vmem:[%s3 + $0x90] sm:$0xff]
      %v376 = vld [vmem:[%s3 + $0x98] sm:$0xff]
      %v377 = vld [vmem:[%s3 + $0xa0] sm:$0xff]
      %v378 = vld [vmem:[%s3 + $0xa8] sm:$0xff]
      %v379 = vld [vmem:[%s3 + $0xb0] sm:$0xff]
      %v380 = vld [vmem:[%s3 + $0xb8] sm:$0xff]
      %v381 = vld [vmem:[%s3 + $0xc0] sm:$0xff]
      %v382 = vld [vmem:[%s3 + $0xc8] sm:$0xff]
      %v383 = vld [vmem:[%s3 + $0xd0] sm:$0xff]
      %v384 = vld [vmem:[%s3 + $0xd8] sm:$0xff]
      %v385 = vld [vmem:[%s3 + $0xe0] sm:$0xff]
      %v386 = vld [vmem:[%s3 + $0xe8] sm:$0xff]
      %v387 = vld [vmem:[%s3 + $0xf0] sm:$0xff]
      %v388 = vld [vmem:[%s3 + $0xf8] sm:$0xff]
      %v389 = vld [vmem:[%s3 + $0x100] sm:$0xff]
      %v390 = vld [vmem:[%s3 + $0x108] sm:$0xff]
      %v391 = vld [vmem:[%s3 + $0x110] sm:$0xff]
      %v392 = vld [vmem:[%s3 + $0x118] sm:$0xff]
      %v393 = vld [vmem:[%s3 + $0x120] sm:$0xff]
      %v394 = vld [vmem:[%s3 + $0x128] sm:$0xff]
      %v395 = vld [vmem:[%s3 + $0x130] sm:$0xff]
      %v396 = vld [vmem:[%s3 + $0x138] sm:$0xff]
      %s397 = scalar_lea.vmem %s3, 320
      %v398 = vld [vmem:[%s397] sm:$0xff]
      %v399 = vld [vmem:[%s397 + $0x8] sm:$0xff]
      %v400 = vld [vmem:[%s397 + $0x10] sm:$0xff]
      %v401 = vld [vmem:[%s397 + $0x18] sm:$0xff]
      %v402 = vld [vmem:[%s397 + $0x20] sm:$0xff]
      %v403 = vld [vmem:[%s397 + $0x28] sm:$0xff]
      %v404 = vld [vmem:[%s397 + $0x30] sm:$0xff]
      %v405 = vld [vmem:[%s397 + $0x38] sm:$0xff]
      %v406 = vld [vmem:[%s397 + $0x40] sm:$0xff]
      %v407 = vld [vmem:[%s397 + $0x48] sm:$0xff]
      %v408 = vld [vmem:[%s397 + $0x50] sm:$0xff]
      %v409 = vld [vmem:[%s397 + $0x58] sm:$0xff]
      %v410 = vld [vmem:[%s397 + $0x60] sm:$0xff]
      %v411 = vld [vmem:[%s397 + $0x68] sm:$0xff]
      %v412 = vld [vmem:[%s397 + $0x70] sm:$0xff]
      %v413 = vld [vmem:[%s397 + $0x78] sm:$0xff]
      %v414 = vld [vmem:[%s397 + $0x80] sm:$0xff]
      %v415 = vld [vmem:[%s397 + $0x88] sm:$0xff]
      %v416 = vld [vmem:[%s397 + $0x90] sm:$0xff]
      %v417 = vld [vmem:[%s397 + $0x98] sm:$0xff]
      %v418 = vld [vmem:[%s397 + $0xa0] sm:$0xff]
      %v419 = vld [vmem:[%s397 + $0xa8] sm:$0xff]
      %v420 = vld [vmem:[%s397 + $0xb0] sm:$0xff]
      %v421 = vld [vmem:[%s397 + $0xb8] sm:$0xff]
      %v422 = vld [vmem:[%s397 + $0xc0] sm:$0xff]
      %v423 = vld [vmem:[%s397 + $0xc8] sm:$0xff]
      %v424 = vld [vmem:[%s397 + $0xd0] sm:$0xff]
      %v425 = vld [vmem:[%s397 + $0xd8] sm:$0xff]
      %v426 = vld [vmem:[%s397 + $0xe0] sm:$0xff]
      %v427 = vld [vmem:[%s397 + $0xe8] sm:$0xff]
      %v428 = vld [vmem:[%s397 + $0xf0] sm:$0xff]
      %v429 = vld [vmem:[%s397 + $0xf8] sm:$0xff]
      %v430 = vld [vmem:[%s397 + $0x100] sm:$0xff]
      %v431 = vld [vmem:[%s397 + $0x108] sm:$0xff]
      %v432 = vld [vmem:[%s397 + $0x110] sm:$0xff]
      %v433 = vld [vmem:[%s397 + $0x118] sm:$0xff]
      %v434 = vld [vmem:[%s397 + $0x120] sm:$0xff]
      %v435 = vld [vmem:[%s397 + $0x128] sm:$0xff]
      %v436 = vld [vmem:[%s397 + $0x130] sm:$0xff]
      %v437 = vld [vmem:[%s397 + $0x138] sm:$0xff]
      %vm442 = vcmask 1046528
      %v443 = vrot.slane %v353, 1
      %v444 = vrot.slane %v355, 1
      %v445 = vsel %vm442, %v443, %v444
      %v446 = vrot.slane %v354, 1
      %v447 = vrot.slane %v356, 1
      %v448 = vsel %vm442, %v446, %v447
      %vm451 = vcmask 261120
      %v452 = vsel %vm451, %v448, 0
      %v454 = vsel %vm451, %v447, 0
      %456 = vmatpush.msra.mxu0 %v428
      %457 = vmatpush.msra.mxu0 %v426
      %458 = vmatpush.msra.mxu0 %v424
      %459 = vmatpush.msra.mxu0 %v422
      %460 = vmatpush.msra.mxu0 %v420
      %461 = vmatpush.msra.mxu0 %v418
      %462 = vmatpush.msra.mxu0 %v416
      %463 = vmatpush.msra.mxu0 %v414
      %464 = vmatpush.msra.mxu0 %v412
      %465 = vmatpush.msra.mxu0 %v410
      %466 = vmatpush.msra.mxu0 %v408
      %467 = vmatpush.msra.mxu0 %v406
      %468 = vmatpush.msra.mxu0 %v404
      %469 = vmatpush.msra.mxu0 %v402
      %470 = vmatpush.msra.mxu0 %v400
      %471 = vmatpush.msra.mxu0 %v398
      %472 = vmatmul.f32.gmra.mxu0 %v445
      %v473 = vpop.f32.mrf.mxu0
      %v474 = vadd.f32 0.0, %v473
      %475 = vmatmul.f32.gmra.mxu0 %v444
      %v476 = vpop.f32.mrf.mxu0
      %v477 = vadd.f32 0.0, %v476
      %478 = vdwg.mxu0
      %479 = vmatpush.msra.mxu0 0.0
      %480 = vmatpush.msra.mxu0 0.0
      %481 = vmatpush.msra.mxu0 0.0
      %482 = vmatpush.msra.mxu0 0.0
      %483 = vmatpush.msra.mxu0 0.0
      %484 = vmatpush.msra.mxu0 0.0
      %485 = vmatpush.msra.mxu0 0.0
      %486 = vmatpush.msra.mxu0 0.0
      %487 = vmatpush.msra.mxu0 0.0
      %488 = vmatpush.msra.mxu0 0.0
      %489 = vmatpush.msra.mxu0 0.0
      %490 = vmatpush.msra.mxu0 0.0
      %491 = vmatpush.msra.mxu0 %v436
      %492 = vmatpush.msra.mxu0 %v434
      %493 = vmatpush.msra.mxu0 %v432
      %494 = vmatpush.msra.mxu0 %v430
      %495 = vmatmul.f32.gmra.mxu0 %v452
      %v496 = vpop.f32.mrf.mxu0
      %v497 = vadd.f32 %v474, %v496
      %498 = vmatmul.f32.gmra.mxu0 %v454
      %v499 = vpop.f32.mrf.mxu0
      %v500 = vadd.f32 %v477, %v499
      %501 = vdwg.mxu0
      %502 = vmatpush.msra.mxu0 %v429
      %503 = vmatpush.msra.mxu0 %v427
      %504 = vmatpush.msra.mxu0 %v425
      %505 = vmatpush.msra.mxu0 %v423
      %506 = vmatpush.msra.mxu0 %v421
      %507 = vmatpush.msra.mxu0 %v419
      %508 = vmatpush.msra.mxu0 %v417
      %509 = vmatpush.msra.mxu0 %v415
      %510 = vmatpush.msra.mxu0 %v413
      %511 = vmatpush.msra.mxu0 %v411
      %512 = vmatpush.msra.mxu0 %v409
      %513 = vmatpush.msra.mxu0 %v407
      %514 = vmatpush.msra.mxu0 %v405
      %515 = vmatpush.msra.mxu0 %v403
      %516 = vmatpush.msra.mxu0 %v401
      %517 = vmatpush.msra.mxu0 %v399
      %518 = vmatmul.f32.gmra.mxu0 %v445
      %v519 = vpop.f32.mrf.mxu0
      %v520 = vadd.f32 0.0, %v519
      %521 = vmatmul.f32.gmra.mxu0 %v444
      %v522 = vpop.f32.mrf.mxu0
      %v523 = vadd.f32 0.0, %v522
      %524 = vdwg.mxu0
      %525 = vmatpush.msra.mxu0 0.0
      %526 = vmatpush.msra.mxu0 0.0
      %527 = vmatpush.msra.mxu0 0.0
      %528 = vmatpush.msra.mxu0 0.0
      %529 = vmatpush.msra.mxu0 0.0
      %530 = vmatpush.msra.mxu0 0.0
      %531 = vmatpush.msra.mxu0 0.0
      %532 = vmatpush.msra.mxu0 0.0
      %533 = vmatpush.msra.mxu0 0.0
      %534 = vmatpush.msra.mxu0 0.0
      %535 = vmatpush.msra.mxu0 0.0
      %536 = vmatpush.msra.mxu0 0.0
      %537 = vmatpush.msra.mxu0 %v437
      %538 = vmatpush.msra.mxu0 %v435
      %539 = vmatpush.msra.mxu0 %v433
      %540 = vmatpush.msra.mxu0 %v431
      %541 = vmatmul.f32.gmra.mxu0 %v452
      %v542 = vpop.f32.mrf.mxu0
      %v543 = vadd.f32 %v520, %v542
      %544 = vmatmul.f32.gmra.mxu0 %v454
      %v545 = vpop.f32.mrf.mxu0
      %v546 = vadd.f32 %v523, %v545
      %547 = vdwg.mxu0
      %v548 = vsel %vm451, %v354, 0
      %v550 = vsel %vm451, %v356, 0
      %552 = vmatpush.msra.mxu0 %v387
      %553 = vmatpush.msra.mxu0 %v385
      %554 = vmatpush.msra.mxu0 %v383
      %555 = vmatpush.msra.mxu0 %v381
      %556 = vmatpush.msra.mxu0 %v379
      %557 = vmatpush.msra.mxu0 %v377
      %558 = vmatpush.msra.mxu0 %v375
      %559 = vmatpush.msra.mxu0 %v373
      %560 = vmatpush.msra.mxu0 %v371
      %561 = vmatpush.msra.mxu0 %v369
      %562 = vmatpush.msra.mxu0 %v367
      %563 = vmatpush.msra.mxu0 %v365
      %564 = vmatpush.msra.mxu0 %v363
      %565 = vmatpush.msra.mxu0 %v361
      %566 = vmatpush.msra.mxu0 %v359
      %567 = vmatpush.msra.mxu0 %v357
      %568 = vmatmul.f32.gmra.mxu0 %v353
      %v569 = vpop.f32.mrf.mxu0
      %v570 = vadd.f32 %v497, %v569
      %571 = vmatmul.f32.gmra.mxu0 %v355
      %v572 = vpop.f32.mrf.mxu0
      %v573 = vadd.f32 %v500, %v572
      %574 = vdwg.mxu0
      %575 = vmatpush.msra.mxu0 0.0
      %576 = vmatpush.msra.mxu0 0.0
      %577 = vmatpush.msra.mxu0 0.0
      %578 = vmatpush.msra.mxu0 0.0
      %579 = vmatpush.msra.mxu0 0.0
      %580 = vmatpush.msra.mxu0 0.0
      %581 = vmatpush.msra.mxu0 0.0
      %582 = vmatpush.msra.mxu0 0.0
      %583 = vmatpush.msra.mxu0 0.0
      %584 = vmatpush.msra.mxu0 0.0
      %585 = vmatpush.msra.mxu0 0.0
      %586 = vmatpush.msra.mxu0 0.0
      %587 = vmatpush.msra.mxu0 %v395
      %588 = vmatpush.msra.mxu0 %v393
      %589 = vmatpush.msra.mxu0 %v391
      %590 = vmatpush.msra.mxu0 %v389
      %591 = vmatmul.f32.gmra.mxu0 %v548
      %v592 = vpop.f32.mrf.mxu0
      %v593 = vadd.f32 %v570, %v592
      %594 = vmatmul.f32.gmra.mxu0 %v550
      %v595 = vpop.f32.mrf.mxu0
      %v596 = vadd.f32 %v573, %v595
      %597 = vdwg.mxu0
      %598 = vmatpush.msra.mxu0 %v388
      %599 = vmatpush.msra.mxu0 %v386
      %600 = vmatpush.msra.mxu0 %v384
      %601 = vmatpush.msra.mxu0 %v382
      %602 = vmatpush.msra.mxu0 %v380
      %603 = vmatpush.msra.mxu0 %v378
      %604 = vmatpush.msra.mxu0 %v376
      %605 = vmatpush.msra.mxu0 %v374
      %606 = vmatpush.msra.mxu0 %v372
      %607 = vmatpush.msra.mxu0 %v370
      %608 = vmatpush.msra.mxu0 %v368
      %609 = vmatpush.msra.mxu0 %v366
      %610 = vmatpush.msra.mxu0 %v364
      %611 = vmatpush.msra.mxu0 %v362
      %612 = vmatpush.msra.mxu0 %v360
      %613 = vmatpush.msra.mxu0 %v358
      %614 = vmatmul.f32.gmra.mxu0 %v353
      %v615 = vpop.f32.mrf.mxu0
      %v616 = vadd.f32 %v543, %v615
      %617 = vmatmul.f32.gmra.mxu0 %v355
      %v618 = vpop.f32.mrf.mxu0
      %v619 = vadd.f32 %v546, %v618
      %620 = vdwg.mxu0
      %621 = vmatpush.msra.mxu0 0.0
      %622 = vmatpush.msra.mxu0 0.0
      %623 = vmatpush.msra.mxu0 0.0
      %624 = vmatpush.msra.mxu0 0.0
      %625 = vmatpush.msra.mxu0 0.0
      %626 = vmatpush.msra.mxu0 0.0
      %627 = vmatpush.msra.mxu0 0.0
      %628 = vmatpush.msra.mxu0 0.0
      %629 = vmatpush.msra.mxu0 0.0
      %630 = vmatpush.msra.mxu0 0.0
      %631 = vmatpush.msra.mxu0 0.0
      %632 = vmatpush.msra.mxu0 0.0
      %633 = vmatpush.msra.mxu0 %v396
      %634 = vmatpush.msra.mxu0 %v394
      %635 = vmatpush.msra.mxu0 %v392
      %636 = vmatpush.msra.mxu0 %v390
      %637 = vmatmul.f32.gmra.mxu0 %v548
      %v638 = vpop.f32.mrf.mxu0
      %v639 = vadd.f32 %v616, %v638
      %640 = vmatmul.f32.gmra.mxu0 %v550
      %v641 = vpop.f32.mrf.mxu0
      %v642 = vadd.f32 %v619, %v641
      %643 = vdwg.mxu0
      %s644 = scalar_lea.vmem %s3, 640
      %v645 = vld [vmem:[%s644] sm:$0xff]
      %v646 = vld [vmem:[%s644 + $0x8] sm:$0xff]
      %v647 = vld [vmem:[%s644 + $0x10] sm:$0xff]
      %v648 = vld [vmem:[%s644 + $0x18] sm:$0xff]
      %v649 = vld [vmem:[%s644 + $0x20] sm:$0xff]
      %v650 = vld [vmem:[%s644 + $0x28] sm:$0xff]
      %v651 = vld [vmem:[%s644 + $0x30] sm:$0xff]
      %v652 = vld [vmem:[%s644 + $0x38] sm:$0xff]
      %v653 = vld [vmem:[%s644 + $0x40] sm:$0xff]
      %v654 = vld [vmem:[%s644 + $0x48] sm:$0xff]
      %v655 = vld [vmem:[%s644 + $0x50] sm:$0xff]
      %v656 = vld [vmem:[%s644 + $0x58] sm:$0xff]
      %v657 = vld [vmem:[%s644 + $0x60] sm:$0xff]
      %v658 = vld [vmem:[%s644 + $0x68] sm:$0xff]
      %v659 = vld [vmem:[%s644 + $0x70] sm:$0xff]
      %v660 = vld [vmem:[%s644 + $0x78] sm:$0xff]
      %v661 = vld [vmem:[%s644 + $0x80] sm:$0xff]
      %v662 = vld [vmem:[%s644 + $0x88] sm:$0xff]
      %v663 = vld [vmem:[%s644 + $0x90] sm:$0xff]
      %v664 = vld [vmem:[%s644 + $0x98] sm:$0xff]
      %v665 = vld [vmem:[%s644 + $0xa0] sm:$0xff]
      %v666 = vld [vmem:[%s644 + $0xa8] sm:$0xff]
      %v667 = vld [vmem:[%s644 + $0xb0] sm:$0xff]
      %v668 = vld [vmem:[%s644 + $0xb8] sm:$0xff]
      %v669 = vld [vmem:[%s644 + $0xc0] sm:$0xff]
      %v670 = vld [vmem:[%s644 + $0xc8] sm:$0xff]
      %v671 = vld [vmem:[%s644 + $0xd0] sm:$0xff]
      %v672 = vld [vmem:[%s644 + $0xd8] sm:$0xff]
      %v673 = vld [vmem:[%s644 + $0xe0] sm:$0xff]
      %v674 = vld [vmem:[%s644 + $0xe8] sm:$0xff]
      %v675 = vld [vmem:[%s644 + $0xf0] sm:$0xff]
      %v676 = vld [vmem:[%s644 + $0xf8] sm:$0xff]
      %v677 = vld [vmem:[%s644 + $0x100] sm:$0xff]
      %v678 = vld [vmem:[%s644 + $0x108] sm:$0xff]
      %v679 = vld [vmem:[%s644 + $0x110] sm:$0xff]
      %v680 = vld [vmem:[%s644 + $0x118] sm:$0xff]
      %v681 = vld [vmem:[%s644 + $0x120] sm:$0xff]
      %v682 = vld [vmem:[%s644 + $0x128] sm:$0xff]
      %v683 = vld [vmem:[%s644 + $0x130] sm:$0xff]
      %v684 = vld [vmem:[%s644 + $0x138] sm:$0xff]
      %vm685 = vcmask 1045504
      %v686 = vrot.slane %v353, 2
      %v687 = vrot.slane %v355, 2
      %v688 = vsel %vm685, %v686, %v687
      %v689 = vrot.slane %v354, 2
      %v690 = vrot.slane %v356, 2
      %v691 = vsel %vm685, %v689, %v690
      %v694 = vsel %vm451, %v691, 0
      %v696 = vsel %vm451, %v690, 0
      %698 = vmatpush.msra.mxu0 %v675
      %699 = vmatpush.msra.mxu0 %v673
      %700 = vmatpush.msra.mxu0 %v671
      %701 = vmatpush.msra.mxu0 %v669
      %702 = vmatpush.msra.mxu0 %v667
      %703 = vmatpush.msra.mxu0 %v665
      %704 = vmatpush.msra.mxu0 %v663
      %705 = vmatpush.msra.mxu0 %v661
      %706 = vmatpush.msra.mxu0 %v659
      %707 = vmatpush.msra.mxu0 %v657
      %708 = vmatpush.msra.mxu0 %v655
      %709 = vmatpush.msra.mxu0 %v653
      %710 = vmatpush.msra.mxu0 %v651
      %711 = vmatpush.msra.mxu0 %v649
      %712 = vmatpush.msra.mxu0 %v647
      %713 = vmatpush.msra.mxu0 %v645
      %714 = vmatmul.f32.gmra.mxu0 %v688
      %v715 = vpop.f32.mrf.mxu0
      %v716 = vadd.f32 0.0, %v715
      %717 = vmatmul.f32.gmra.mxu0 %v687
      %v718 = vpop.f32.mrf.mxu0
      %v719 = vadd.f32 0.0, %v718
      %720 = vdwg.mxu0
      %721 = vmatpush.msra.mxu0 0.0
      %722 = vmatpush.msra.mxu0 0.0
      %723 = vmatpush.msra.mxu0 0.0
      %724 = vmatpush.msra.mxu0 0.0
      %725 = vmatpush.msra.mxu0 0.0
      %726 = vmatpush.msra.mxu0 0.0
      %727 = vmatpush.msra.mxu0 0.0
      %728 = vmatpush.msra.mxu0 0.0
      %729 = vmatpush.msra.mxu0 0.0
      %730 = vmatpush.msra.mxu0 0.0
      %731 = vmatpush.msra.mxu0 0.0
      %732 = vmatpush.msra.mxu0 0.0
      %733 = vmatpush.msra.mxu0 %v683
      %734 = vmatpush.msra.mxu0 %v681
      %735 = vmatpush.msra.mxu0 %v679
      %736 = vmatpush.msra.mxu0 %v677
      %737 = vmatmul.f32.gmra.mxu0 %v694
      %v738 = vpop.f32.mrf.mxu0
      %v739 = vadd.f32 %v716, %v738
      %740 = vmatmul.f32.gmra.mxu0 %v696
      %v741 = vpop.f32.mrf.mxu0
      %v742 = vadd.f32 %v719, %v741
      %743 = vdwg.mxu0
      %744 = vmatpush.msra.mxu0 %v676
      %745 = vmatpush.msra.mxu0 %v674
      %746 = vmatpush.msra.mxu0 %v672
      %747 = vmatpush.msra.mxu0 %v670
      %748 = vmatpush.msra.mxu0 %v668
      %749 = vmatpush.msra.mxu0 %v666
      %750 = vmatpush.msra.mxu0 %v664
      %751 = vmatpush.msra.mxu0 %v662
      %752 = vmatpush.msra.mxu0 %v660
      %753 = vmatpush.msra.mxu0 %v658
      %754 = vmatpush.msra.mxu0 %v656
      %755 = vmatpush.msra.mxu0 %v654
      %756 = vmatpush.msra.mxu0 %v652
      %757 = vmatpush.msra.mxu0 %v650
      %758 = vmatpush.msra.mxu0 %v648
      %759 = vmatpush.msra.mxu0 %v646
      %760 = vmatmul.f32.gmra.mxu0 %v688
      %v761 = vpop.f32.mrf.mxu0
      %v762 = vadd.f32 0.0, %v761
      %763 = vmatmul.f32.gmra.mxu0 %v687
      %v764 = vpop.f32.mrf.mxu0
      %v765 = vadd.f32 0.0, %v764
      %766 = vdwg.mxu0
      %767 = vmatpush.msra.mxu0 0.0
      %768 = vmatpush.msra.mxu0 0.0
      %769 = vmatpush.msra.mxu0 0.0
      %770 = vmatpush.msra.mxu0 0.0
      %771 = vmatpush.msra.mxu0 0.0
      %772 = vmatpush.msra.mxu0 0.0
      %773 = vmatpush.msra.mxu0 0.0
      %774 = vmatpush.msra.mxu0 0.0
      %775 = vmatpush.msra.mxu0 0.0
      %776 = vmatpush.msra.mxu0 0.0
      %777 = vmatpush.msra.mxu0 0.0
      %778 = vmatpush.msra.mxu0 0.0
      %779 = vmatpush.msra.mxu0 %v684
      %780 = vmatpush.msra.mxu0 %v682
      %781 = vmatpush.msra.mxu0 %v680
      %782 = vmatpush.msra.mxu0 %v678
      %783 = vmatmul.f32.gmra.mxu0 %v694
      %v784 = vpop.f32.mrf.mxu0
      %v785 = vadd.f32 %v762, %v784
      %786 = vmatmul.f32.gmra.mxu0 %v696
      %v787 = vpop.f32.mrf.mxu0
      %v788 = vadd.f32 %v765, %v787
      %789 = vdwg.mxu0
      %v790 = vadd.f32 %v593, %v739
      %v791 = vadd.f32 %v639, %v785
      %v792 = vadd.f32 %v596, %v742
      %v793 = vadd.f32 %v642, %v788
      %v794 = vld [vmem:[%s4] sm:$0x3]
      %v796 = vperm.slane %v794, 0
      %v797 = vperm.slane %v794, 1
      %v800 = vadd.f32 %v790, %v796
      %v801 = vadd.f32 %v791, %v797
      %v802 = vadd.f32 %v792, %v796
      %v803 = vadd.f32 %v793, %v797
      %v804 = vld [vmem:[%s339] sm:$0xff]
      %v805 = vld [vmem:[%s339 + $0x8] sm:$0xff]
      %v806 = vld [vmem:[%s339 + $0x10] sm:$0x3]
      %v807 = vld [vmem:[%s339 + $0x18] sm:$0x3]
      %v808 = vmul.f32 %v800, %v804
      %v809 = vmul.f32 %v801, %v805
      %v810 = vmul.f32 %v802, %v806
      %v811 = vmul.f32 %v803, %v807
      %v812 = vld [vmem:[%s344] sm:$0xff]
      %v813 = vld [vmem:[%s344 + $0x8] sm:$0xff]
      %v814 = vld [vmem:[%s344 + $0x10] sm:$0x3]
      %v815 = vld [vmem:[%s344 + $0x18] sm:$0x3]
      %v816 = vadd.f32 %v808, %v812
      %v817 = vadd.f32 %v809, %v813
      %v818 = vadd.f32 %v810, %v814
      %v819 = vadd.f32 %v811, %v815
      %v820 = vld [vmem:[%s5] sm:$0xff]
      %v821 = vld [vmem:[%s5 + $0x8] sm:$0xff]
      %v822 = vld [vmem:[%s5 + $0x10] sm:$0xff]
      %v823 = vld [vmem:[%s5 + $0x18] sm:$0xff]
      %v824 = vld [vmem:[%s5 + $0x20] sm:$0xff]
      %v825 = vld [vmem:[%s5 + $0x28] sm:$0xff]
      %v826 = vld [vmem:[%s5 + $0x30] sm:$0xff]
      %v827 = vld [vmem:[%s5 + $0x38] sm:$0xff]
      %v828 = vld [vmem:[%s5 + $0x40] sm:$0xff]
      %v829 = vld [vmem:[%s5 + $0x48] sm:$0xff]
      %v830 = vld [vmem:[%s5 + $0x50] sm:$0xff]
      %v831 = vld [vmem:[%s5 + $0x58] sm:$0xff]
      %v832 = vld [vmem:[%s5 + $0x60] sm:$0xff]
      %v833 = vld [vmem:[%s5 + $0x68] sm:$0xff]
      %v834 = vld [vmem:[%s5 + $0x70] sm:$0xff]
      %v835 = vld [vmem:[%s5 + $0x78] sm:$0xff]
      %v836 = vld [vmem:[%s5 + $0x80] sm:$0xff]
      %v837 = vld [vmem:[%s5 + $0x88] sm:$0xff]
      %s838 = scalar_lea.vmem %s5, 144
      %v839 = vld [vmem:[%s838] sm:$0xff]
      %v840 = vld [vmem:[%s838 + $0x8] sm:$0xff]
      %v841 = vld [vmem:[%s838 + $0x10] sm:$0xff]
      %v842 = vld [vmem:[%s838 + $0x18] sm:$0xff]
      %v843 = vld [vmem:[%s838 + $0x20] sm:$0xff]
      %v844 = vld [vmem:[%s838 + $0x28] sm:$0xff]
      %v845 = vld [vmem:[%s838 + $0x30] sm:$0xff]
      %v846 = vld [vmem:[%s838 + $0x38] sm:$0xff]
      %v847 = vld [vmem:[%s838 + $0x40] sm:$0xff]
      %v848 = vld [vmem:[%s838 + $0x48] sm:$0xff]
      %v849 = vld [vmem:[%s838 + $0x50] sm:$0xff]
      %v850 = vld [vmem:[%s838 + $0x58] sm:$0xff]
      %v851 = vld [vmem:[%s838 + $0x60] sm:$0xff]
      %v852 = vld [vmem:[%s838 + $0x68] sm:$0xff]
      %v853 = vld [vmem:[%s838 + $0x70] sm:$0xff]
      %v854 = vld [vmem:[%s838 + $0x78] sm:$0xff]
      %v855 = vld [vmem:[%s838 + $0x80] sm:$0xff]
      %v856 = vld [vmem:[%s838 + $0x88] sm:$0xff]
      %v861 = vrot.slane %v816, 1
      %v862 = vrot.slane %v818, 1
      %v863 = vsel %vm442, %v861, %v862
      %v864 = vrot.slane %v817, 1
      %v865 = vrot.slane %v819, 1
      %v866 = vsel %vm442, %v864, %v865
      %vm868 = vcmask 130048
      %v869 = vsel %vm868, %v866, 0
      %871 = vmatpush.msra.mxu0 %v854
      %872 = vmatpush.msra.mxu0 %v853
      %873 = vmatpush.msra.mxu0 %v852
      %874 = vmatpush.msra.mxu0 %v851
      %875 = vmatpush.msra.mxu0 %v850
      %876 = vmatpush.msra.mxu0 %v849
      %877 = vmatpush.msra.mxu0 %v848
      %878 = vmatpush.msra.mxu0 %v847
      %879 = vmatpush.msra.mxu0 %v846
      %880 = vmatpush.msra.mxu0 %v845
      %881 = vmatpush.msra.mxu0 %v844
      %882 = vmatpush.msra.mxu0 %v843
      %883 = vmatpush.msra.mxu0 %v842
      %884 = vmatpush.msra.mxu0 %v841
      %885 = vmatpush.msra.mxu0 %v840
      %886 = vmatpush.msra.mxu0 %v839
      %887 = vmatmul.f32.gmra.mxu0 %v863
      %v888 = vpop.f32.mrf.mxu0
      %v889 = vadd.f32 0.0, %v888
      %890 = vdwg.mxu0
      %891 = vmatpush.msra.mxu0 0.0
      %892 = vmatpush.msra.mxu0 0.0
      %893 = vmatpush.msra.mxu0 0.0
      %894 = vmatpush.msra.mxu0 0.0
      %895 = vmatpush.msra.mxu0 0.0
      %896 = vmatpush.msra.mxu0 0.0
      %897 = vmatpush.msra.mxu0 0.0
      %898 = vmatpush.msra.mxu0 0.0
      %899 = vmatpush.msra.mxu0 0.0
      %900 = vmatpush.msra.mxu0 0.0
      %901 = vmatpush.msra.mxu0 0.0
      %902 = vmatpush.msra.mxu0 0.0
      %903 = vmatpush.msra.mxu0 0.0
      %904 = vmatpush.msra.mxu0 0.0
      %905 = vmatpush.msra.mxu0 %v856
      %906 = vmatpush.msra.mxu0 %v855
      %907 = vmatmul.f32.gmra.mxu0 %v869
      %v908 = vpop.f32.mrf.mxu0
      %v909 = vadd.f32 %v889, %v908
      %910 = vdwg.mxu0
      %v911 = vsel %vm868, %v817, 0
      %913 = vmatpush.msra.mxu0 %v835
      %914 = vmatpush.msra.mxu0 %v834
      %915 = vmatpush.msra.mxu0 %v833
      %916 = vmatpush.msra.mxu0 %v832
      %917 = vmatpush.msra.mxu0 %v831
      %918 = vmatpush.msra.mxu0 %v830
      %919 = vmatpush.msra.mxu0 %v829
      %920 = vmatpush.msra.mxu0 %v828
      %921 = vmatpush.msra.mxu0 %v827
      %922 = vmatpush.msra.mxu0 %v826
      %923 = vmatpush.msra.mxu0 %v825
      %924 = vmatpush.msra.mxu0 %v824
      %925 = vmatpush.msra.mxu0 %v823
      %926 = vmatpush.msra.mxu0 %v822
      %927 = vmatpush.msra.mxu0 %v821
      %928 = vmatpush.msra.mxu0 %v820
      %929 = vmatmul.f32.gmra.mxu0 %v816
      %v930 = vpop.f32.mrf.mxu0
      %v931 = vadd.f32 %v909, %v930
      %932 = vdwg.mxu0
      %933 = vmatpush.msra.mxu0 0.0
      %934 = vmatpush.msra.mxu0 0.0
      %935 = vmatpush.msra.mxu0 0.0
      %936 = vmatpush.msra.mxu0 0.0
      %937 = vmatpush.msra.mxu0 0.0
      %938 = vmatpush.msra.mxu0 0.0
      %939 = vmatpush.msra.mxu0 0.0
      %940 = vmatpush.msra.mxu0 0.0
      %941 = vmatpush.msra.mxu0 0.0
      %942 = vmatpush.msra.mxu0 0.0
      %943 = vmatpush.msra.mxu0 0.0
      %944 = vmatpush.msra.mxu0 0.0
      %945 = vmatpush.msra.mxu0 0.0
      %946 = vmatpush.msra.mxu0 0.0
      %947 = vmatpush.msra.mxu0 %v837
      %948 = vmatpush.msra.mxu0 %v836
      %949 = vmatmul.f32.gmra.mxu0 %v911
      %v950 = vpop.f32.mrf.mxu0
      %v951 = vadd.f32 %v931, %v950
      %952 = vdwg.mxu0
      %s953 = scalar_lea.vmem %s5, 288
      %v954 = vld [vmem:[%s953] sm:$0xff]
      %v955 = vld [vmem:[%s953 + $0x8] sm:$0xff]
      %v956 = vld [vmem:[%s953 + $0x10] sm:$0xff]
      %v957 = vld [vmem:[%s953 + $0x18] sm:$0xff]
      %v958 = vld [vmem:[%s953 + $0x20] sm:$0xff]
      %v959 = vld [vmem:[%s953 + $0x28] sm:$0xff]
      %v960 = vld [vmem:[%s953 + $0x30] sm:$0xff]
      %v961 = vld [vmem:[%s953 + $0x38] sm:$0xff]
      %v962 = vld [vmem:[%s953 + $0x40] sm:$0xff]
      %v963 = vld [vmem:[%s953 + $0x48] sm:$0xff]
      %v964 = vld [vmem:[%s953 + $0x50] sm:$0xff]
      %v965 = vld [vmem:[%s953 + $0x58] sm:$0xff]
      %v966 = vld [vmem:[%s953 + $0x60] sm:$0xff]
      %v967 = vld [vmem:[%s953 + $0x68] sm:$0xff]
      %v968 = vld [vmem:[%s953 + $0x70] sm:$0xff]
      %v969 = vld [vmem:[%s953 + $0x78] sm:$0xff]
      %v970 = vld [vmem:[%s953 + $0x80] sm:$0xff]
      %v971 = vld [vmem:[%s953 + $0x88] sm:$0xff]
      %v972 = vrot.slane %v816, 2
      %v973 = vrot.slane %v818, 2
      %v974 = vsel %vm685, %v972, %v973
      %v975 = vrot.slane %v817, 2
      %v976 = vrot.slane %v819, 2
      %v977 = vsel %vm685, %v975, %v976
      %v979 = vsel %vm868, %v977, 0
      %981 = vmatpush.msra.mxu0 %v969
      %982 = vmatpush.msra.mxu0 %v968
      %983 = vmatpush.msra.mxu0 %v967
      %984 = vmatpush.msra.mxu0 %v966
      %985 = vmatpush.msra.mxu0 %v965
      %986 = vmatpush.msra.mxu0 %v964
      %987 = vmatpush.msra.mxu0 %v963
      %988 = vmatpush.msra.mxu0 %v962
      %989 = vmatpush.msra.mxu0 %v961
      %990 = vmatpush.msra.mxu0 %v960
      %991 = vmatpush.msra.mxu0 %v959
      %992 = vmatpush.msra.mxu0 %v958
      %993 = vmatpush.msra.mxu0 %v957
      %994 = vmatpush.msra.mxu0 %v956
      %995 = vmatpush.msra.mxu0 %v955
      %996 = vmatpush.msra.mxu0 %v954
      %997 = vmatmul.f32.gmra.mxu0 %v974
      %v998 = vpop.f32.mrf.mxu0
      %v999 = vadd.f32 0.0, %v998
      %1000 = vdwg.mxu0
      %1001 = vmatpush.msra.mxu0 0.0
      %1002 = vmatpush.msra.mxu0 0.0
      %1003 = vmatpush.msra.mxu0 0.0
      %1004 = vmatpush.msra.mxu0 0.0
      %1005 = vmatpush.msra.mxu0 0.0
      %1006 = vmatpush.msra.mxu0 0.0
      %1007 = vmatpush.msra.mxu0 0.0
      %1008 = vmatpush.msra.mxu0 0.0
      %1009 = vmatpush.msra.mxu0 0.0
      %1010 = vmatpush.msra.mxu0 0.0
      %1011 = vmatpush.msra.mxu0 0.0
      %1012 = vmatpush.msra.mxu0 0.0
      %1013 = vmatpush.msra.mxu0 0.0
      %1014 = vmatpush.msra.mxu0 0.0
      %1015 = vmatpush.msra.mxu0 %v971
      %1016 = vmatpush.msra.mxu0 %v970
      %1017 = vmatmul.f32.gmra.mxu0 %v979
      %v1018 = vpop.f32.mrf.mxu0
      %v1019 = vadd.f32 %v999, %v1018
      %1020 = vdwg.mxu0
      %v1021 = vadd.f32 %v951, %v1019
      %v1022 = vld [vmem:[%s6] sm:$0x1]
      %v1024 = vperm.slane %v1022, 0
      %v1026 = vadd.f32 %v1021, %v1024
      %v1028 = vrot.slane %v1026, 7
      %1029 = vrot.lane.b32.xlu0 %v1028, 8
      %v1030 = vpop.permute.xlu0 %1029
      %v1032 = vadd.f32 %v800, %v1030
      %v1033 = vadd.f32 %v801, %v1030
      %v1034 = vadd.f32 %v802, %v1030
      %v1035 = vadd.f32 %v803, %v1030
      %1040 = vrot.lane.b32.xlu0 %v1032, 120
      %v1041 = vpop.permute.xlu0 %1040
      %1042 = vrot.lane.b32.xlu0 %v1033, 120
      %v1043 = vpop.permute.xlu0 %1042
      %1044 = vrot.lane.b32.xlu0 %v1034, 120
      %v1045 = vpop.permute.xlu0 %1044
      %1046 = vrot.lane.b32.xlu0 %v1035, 120
      %v1047 = vpop.permute.xlu0 %1046
      %vm1048 = vcmask 982016
      %v1049 = vsel %vm1048, %v1041, %v1043
      %v1050 = vsel %vm1048, %v1045, %v1047
      %1053 = vst [vmem:[%s352 - $0x1] sm:$0xfe] %v1049
      %1054 = vst [vmem:[%s352 + $0x7] sm:$0x1] %v1050
      %p1055 = scmp.lt.s32.totalorder %s22, 1
      %s1056 = scalar_select %p1055, %s22, 1
      %p1057 = scmp.lt.s32.totalorder %s23, 1
      %s1058 = scalar_select %p1057, %s23, 1
      %s1059 = smul.addr %s1056, 2
      %s1060 = sadd.s32 %s1058, %s1059
      %s1061 = smul.addr %s1060, 8
      %s1062 = scalar_lea.vmem %s7, %s1061
      // Predicated region
      $region49: #{feat_enhance.1} parent=47 // pred_check
        %p1063 = pneg %p214
      $region50: #{feat_enhance.1} parent=47 // pred_check_branch
        %1065 = sbr.rel (%p1063) target = $region52
      $region51: #{feat_enhance.1} parent=47 // pred_region
        _
      $region52: #{feat_enhance.1} parent=47 // pred_fallthru
        _
    $region48: #{feat_enhance.1} parent=5 // pred_fallthru
      _
    %p1066 = scmp.le.s32.totalorder 2, %s13
    // Predicated region
    $region53: #{feat_enhance.1} parent=5 // pred_check
      %p1067 = pneg %p1066
    $region54: #{feat_enhance.1} parent=5 // pred_check_branch
      %1069 = sbr.rel (%p1067) target = $region56
    $region55: #{feat_enhance.1} parent=5 // pred_region
      %s1070 = ssub.s32 %s13, 2
      // Predicated region
      $region57: #{feat_enhance.1} parent=55 // pred_check
        %p1071 = pneg %p220
      $region58: #{feat_enhance.1} parent=55 // pred_check_branch
        %1073 = sbr.rel (%p1071) target = $region60
      $region59: #{feat_enhance.1} parent=55 // pred_region
        %p1074 = scmp.lt.s32.totalorder %s24, 1
        %s1075 = scalar_select %p1074, %s24, 1
        %p1076 = scmp.lt.s32.totalorder %s25, 1
        %s1077 = scalar_select %p1076, %s25, 1
        %s1078 = smul.addr %s1075, 2
        %s1079 = sadd.s32 %s1077, %s1078
        %s1080 = smul.addr %s1079, 8
        %s1081 = scalar_lea.vmem %s7, %s1080
      $region60: #{feat_enhance.1} parent=55 // pred_fallthru
        _
    $region56: #{feat_enhance.1} parent=5 // pred_fallthru
      _
  $region6: #{feat_enhance.1} parent=0 // loop_footer
    %s17 = sadd.s32 1, %s13
  $region7: #{feat_enhance.1} parent=0 // loop_footer_branch
    %12 = sbr.rel target = $region3
  $region8: #{feat_enhance.1} parent=0 // loop_exit
    _

</llo_original>
